<compile_context>
chip_gen: v7x
topology: tpu7x:2x2x1
jax: 0.10.0
libtpu: 0.0.40
codegen_flags: <defaults>
</compile_context>

<pallas_src>
from functools import partial

import jax
import jax.numpy as jnp
from jax.experimental import pallas as pl
from jax.experimental.pallas import tpu as pltpu


def _round_up(v, m):
    return ((v + m - 1) // m) * m


def _decoder_kernel(x_ref, wx_ref, wrec_ref, wfc_ref, bfc_ref, y_ref,
                    h_scr, c_scr, xg_scr, hist_scr, *, unroll):
    """One time-chunk of the autoregressive LSTM decoder (FC feedback pre-folded).

    x_ref:    (TC*B, C_pad)  chunk of augmented inputs, rows ordered (t, b); the last
                             real columns are a constant-1 (bias) column and a t==0
                             indicator column.
    wx_ref:   (C_pad, 4H)    [W_x ; bias' ; -(b_fc@W_prev) ; 0-pad] input->gate weights.
    wrec_ref: (H, 4H)        folded recurrent weights  W_hh + W_fc @ W_prev.
    wfc_ref:  (H, O)         fc weight (pre-transposed).
    bfc_ref:  (1, O)         fc bias.
    y_ref:    (TC*B, O)      chunk of fc outputs.
    h_scr:    (B, H)         hidden state carried across chunks (touched once/chunk).
    c_scr:    (B, H)         cell state carried across chunks.
    xg_scr:   (TC*B, 4H)     hoisted input projection (includes bias + t0 correction).
    hist_scr: (TC*B, H)      per-step h history -> one chunk-level FC matmul.
    """
    B, H = h_scr.shape
    TC = hist_scr.shape[0] // B

    @pl.when(pl.program_id(0) == 0)
    def _():
        h_scr[...] = jnp.zeros_like(h_scr)   # module zero-initializes (h, c)
        c_scr[...] = jnp.zeros_like(c_scr)

    # Hoisted input projection (bias and t=0 correction ride along via the extra
    # columns of x / rows of wx): one MXU matmul per chunk.
    xg_scr[...] = jnp.dot(x_ref[...], wx_ref[...], preferred_element_type=jnp.float32)

    def step(t, carry):
        h, c = carry
        base = t * B
        # Single recurrent matmul on the critical path (gate order: i, f, g, o).
        gates = xg_scr[pl.ds(base, B), :] + jnp.dot(
            h, wrec_ref[...], preferred_element_type=jnp.float32)      # (B, 4H)
        i_g = jax.nn.sigmoid(gates[:, 0 * H:1 * H])
        f_g = jax.nn.sigmoid(gates[:, 1 * H:2 * H])
        g_g = jnp.tanh(gates[:, 2 * H:3 * H])
        o_g = jax.nn.sigmoid(gates[:, 3 * H:4 * H])
        c_new = f_g * c + i_g * g_g
        h_new = o_g * jnp.tanh(c_new)
        hist_scr[pl.ds(base, B), :] = h_new        # off the serial dependency chain
        return h_new, c_new

    h0 = h_scr[...]
    c0 = c_scr[...]
    h_f, c_f = jax.lax.fori_loop(0, TC, step, (h0, c0), unroll=unroll)
    h_scr[...] = h_f                               # carry to the next chunk
    c_scr[...] = c_f

    # Chunk-level FC: one MXU matmul + one contiguous store per chunk.
    y_ref[...] = (jnp.dot(hist_scr[...], wfc_ref[...],
                          preferred_element_type=jnp.float32) + bfc_ref[...])


def _span_kernel(idx_ref, mtv_ref, out_ref):
    """span_beat_to_note_num, lane-dense: out[r, n] = mtv[r, idx[n]].

    idx_ref: (1, NC)     int32 measure index per note (offset by hier_numbers[0]).
    mtv_ref: (B*O, T_s)  measure outputs, notes gathered onto the lane dim via one-hot.
    out_ref: (B*O, NC)   128-lane-dense output block.
    """
    T_s = mtv_ref.shape[1]
    NC = idx_ref.shape[1]
    t_iota = jax.lax.broadcasted_iota(jnp.int32, (T_s, NC), 0)
    onehot = (t_iota == idx_ref[...]).astype(jnp.float32)           # (T_s, NC)
    out_ref[...] = jnp.dot(mtv_ref[...], onehot,
                           preferred_element_type=jnp.float32)


def autoregressive_decoder(concat_input, hier_numbers, params,
                           is_padded_element=None, time_chunk=128):
    """Forward pass of AutoregressiveDecoder (LSTM, num_layers=1).

    concat_input: (B, T, C) f32 — per-step features; rnn input is [x_t, prev_out].
    hier_numbers: (N,) int   — hierarchy index per note (gather targets).
    params: pre-transposed weights:
        w_ih (C+O, 4H)  [rows: x features, then prev_out],  w_hh (H, 4H),
        b (1, 4H) = b_ih + b_hh,  w_fc (H, O),  b_fc (1, O)
    Returns (measure_tempo_vel (B, T, O), broadcasted (B, N, O)).
    """
    B, T, C = concat_input.shape
    H = params["w_hh"].shape[0]
    O = params["w_fc"].shape[1]
    G = 4 * H
    assert H % 8 == 0, "hidden_size must be a multiple of 8 for this kernel"

    # ---- one-time weight prep (all folding hoisted out of the recurrence) ----
    w_ih = params["w_ih"].astype(jnp.float32)
    w_x, w_prev = w_ih[:C], w_ih[C:]                       # (C,4H), (O,4H)
    w_hh = params["w_hh"].astype(jnp.float32)
    b = params["b"].reshape(1, G).astype(jnp.float32)
    w_fc = params["w_fc"].astype(jnp.float32)
    b_fc = params["b_fc"].reshape(1, O).astype(jnp.float32)

    # Fold the autoregressive FC feedback:  prev_out_t = h_{t-1} @ W_fc + b_fc  (t>0).
    w_rec = w_hh + w_fc @ w_prev                           # (H, 4H)
    bias_fold = b + b_fc @ w_prev                          # (1, 4H)
    t0_corr = -(b_fc @ w_prev)                             # (1, 4H): prev_out(0) == 0

    # Augment x with a constant-1 column (carries bias_fold) and a t==0 indicator
    # column (carries the correction); both ride the hoisted input projection.
    C_ext = C + 2
    C_pad = _round_up(C_ext, 8)
    wx_pad = (jnp.zeros((C_pad, G), jnp.float32)
              .at[:C].set(w_x)
              .at[C].set(bias_fold[0])
              .at[C + 1].set(t0_corr[0]))

    # ---- input layout: time-major, feature-padded, flattened to (T_pad*B, C_pad) ----
    TC = min(_round_up(T, 8), max(8, _round_up(time_chunk, 8)))
    T_pad = _round_up(T, TC)
    unroll = True if TC <= 32 else 8
    x = jnp.zeros((B, T_pad, C_pad), jnp.float32)
    x = x.at[:, :T, :C].set(concat_input.astype(jnp.float32))
    x = x.at[:, :, C].set(1.0)                             # bias column
    x = x.at[:, 0, C + 1].set(1.0)                         # t==0 correction column
    x_flat = jnp.transpose(x, (1, 0, 2)).reshape(T_pad * B, C_pad)

    y_flat = pl.pallas_call(
        partial(_decoder_kernel, unroll=unroll),
        out_shape=jax.ShapeDtypeStruct((T_pad * B, O), jnp.float32),
        grid_spec=pltpu.PrefetchScalarGridSpec(
            num_scalar_prefetch=0,
            grid=(T_pad // TC,),
            in_specs=[
                pl.BlockSpec((TC * B, C_pad), lambda i: (i, 0)),   # x chunk
                pl.BlockSpec((C_pad, G), lambda i: (0, 0)),        # W_x (+bias rows)
                pl.BlockSpec((H, G), lambda i: (0, 0)),            # folded W_rec
                pl.BlockSpec((H, O), lambda i: (0, 0)),            # fc weight
                pl.BlockSpec((1, O), lambda i: (0, 0)),            # fc bias
            ],
            out_specs=pl.BlockSpec((TC * B, O), lambda i: (i, 0)),
            scratch_shapes=[
                pltpu.VMEM((B, H), jnp.float32),          # h carry (chunk boundary only)
                pltpu.VMEM((B, H), jnp.float32),          # c carry
                pltpu.VMEM((TC * B, G), jnp.float32),     # hoisted input projection
                pltpu.VMEM((TC * B, H), jnp.float32),     # h history for chunk-level FC
            ],
        ),
        compiler_params=pltpu.CompilerParams(
            dimension_semantics=("arbitrary",)),          # autoregressive -> sequential
    )(x_flat, wx_pad, w_rec, w_fc, b_fc)

    y_tm = y_flat.reshape(T_pad, B, O)[:T]                # (T, B, O) time-major
    if is_padded_element is not None:                     # measure_tempo_vel[padded] = 0
        y_tm = jnp.where(jnp.transpose(is_padded_element)[..., None], 0.0, y_tm)
    measure_tempo_vel = jnp.transpose(y_tm, (1, 0, 2))    # (B, T, O)

    # ---- span_beat_to_note_num: gather measure rows to notes (lane-dense layout) ----
    N = hier_numbers.shape[0]
    idx = (hier_numbers - hier_numbers[0]).astype(jnp.int32)
    T_s = _round_up(T, 8)
    mtv_bt = jnp.transpose(measure_tempo_vel, (0, 2, 1)).reshape(B * O, T)
    mtv_bt = jnp.zeros((B * O, T_s), jnp.float32).at[:, :T].set(mtv_bt)
    NC = 128
    N_pad = _round_up(N, NC)
    # Padded note slots point past T_s -> all-zero one-hot column (dropped afterwards).
    idx_pad = jnp.full((1, N_pad), T_s, jnp.int32).at[0, :N].set(idx)

    spanned = pl.pallas_call(
        _span_kernel,
        out_shape=jax.ShapeDtypeStruct((B * O, N_pad), jnp.float32),
        grid_spec=pltpu.PrefetchScalarGridSpec(
            num_scalar_prefetch=0,
            grid=(N_pad // NC,),
            in_specs=[
                pl.BlockSpec((1, NC), lambda n: (0, n)),
                pl.BlockSpec((B * O, T_s), lambda n: (0, 0)),
            ],
            out_specs=pl.BlockSpec((B * O, NC), lambda n: (0, n)),
        ),
        compiler_params=pltpu.CompilerParams(
            dimension_semantics=("parallel",)),
    )(idx_pad, mtv_bt)

    broadcasted = jnp.transpose(spanned[:, :N].reshape(B, O, N), (0, 2, 1))  # (B, N, O)
    return measure_tempo_vel, broadcasted


def _reference(x, hier_numbers, is_padded, params):
    """Pure-JAX reference with the same semantics as the PyTorch forward (no folding)."""
    B, T, C = x.shape
    H = params["w_hh"].shape[0]
    O = params["w_fc"].shape[1]
    w_ih, w_hh, b = params["w_ih"], params["w_hh"], params["b"]
    w_fc, b_fc = params["w_fc"], params["b_fc"]
    x_tm = jnp.transpose(x, (1, 0, 2))

    def step(carry, x_t):
        h, c, prev = carry
        z = jnp.concatenate([x_t, prev], axis=-1)          # cat([x_i, prev_out])
        gates = z @ w_ih + h @ w_hh + b
        i = jax.nn.sigmoid(gates[:, :H])
        f = jax.nn.sigmoid(gates[:, H:2 * H])
        g = jnp.tanh(gates[:, 2 * H:3 * H])
        o = jax.nn.sigmoid(gates[:, 3 * H:])
        c = f * c + i * g
        h = o * jnp.tanh(c)
        out = h @ w_fc + b_fc
        return (h, c, out), out

    init = (jnp.zeros((B, H), jnp.float32), jnp.zeros((B, H), jnp.float32),
            jnp.zeros((B, O), jnp.float32))
    _, outs = jax.lax.scan(step, init, x_tm)               # (T, B, O)
    mtv = jnp.transpose(outs, (1, 0, 2))
    if is_padded is not None:
        mtv = jnp.where(is_padded[..., None], 0.0, mtv)
    idx = hier_numbers - hier_numbers[0]
    return mtv, mtv[:, idx, :]


if __name__ == "__main__":
    key = jax.random.PRNGKey(0)
    B, T, N = 2, 12, 24          # batch, num recurrent steps, num notes
    H, O = 32, 2                 # hidden_size, output_size (tempo, velocity)
    C = 30                       # concat_input features; rnn input_size = C + O = 32

    keys = jax.random.split(key, 7)
    concat_input = jax.random.normal(keys[0], (B, T, C), jnp.float32)
    # trailing padded steps for batch 1
    is_padded = jnp.zeros((B, T), dtype=bool).at[1, 9:].set(True)
    concat_input = jnp.where(is_padded[..., None], 0.0, concat_input)
    hier_numbers = 5 + jnp.arange(N, dtype=jnp.int32) // 2   # 2 notes per step

    scale = 0.1
    params = {
        "w_ih": scale * jax.random.normal(keys[1], (C + O, 4 * H), jnp.float32),
        "w_hh": scale * jax.random.normal(keys[2], (H, 4 * H), jnp.float32),
        "b":    scale * jax.random.normal(keys[3], (1, 4 * H), jnp.float32),
        "w_fc": scale * jax.random.normal(keys[4], (H, O), jnp.float32),
        "b_fc": scale * jax.random.normal(keys[5], (1, O), jnp.float32),
    }

    mtv, broadcasted = autoregressive_decoder(concat_input, hier_numbers, params,
                                              is_padded_element=is_padded)
    mtv, broadcasted = jax.block_until_ready((mtv, broadcasted))

    ref_mtv, ref_b = _reference(concat_input, hier_numbers, is_padded, params)
    assert mtv.shape == (B, T, O), mtv.shape
    assert broadcasted.shape == (B, N, O), broadcasted.shape
    assert jnp.allclose(mtv, ref_mtv, atol=1e-4, rtol=1e-4), "measure output mismatch"
    assert jnp.allclose(broadcasted, ref_b, atol=1e-4, rtol=1e-4), "broadcast output mismatch"
    print("KERNEL_OK")
</pallas_src>

<mosaic_0001>
module attributes {stable_mosaic.version = 11 : i64} {
  func.func @_decoder_kernel(%arg0: i32, %arg1: memref<32x32xf32, #tpu.memory_space<vmem>>, %arg2: memref<32x128xf32, #tpu.memory_space<vmem>>, %arg3: memref<32x128xf32, #tpu.memory_space<vmem>>, %arg4: memref<32x2xf32, #tpu.memory_space<vmem>>, %arg5: memref<1x2xf32, #tpu.memory_space<vmem>>, %arg6: memref<32x2xf32, #tpu.memory_space<vmem>>, %arg7: memref<2x32xf32, #tpu.memory_space<vmem>>, %arg8: memref<2x32xf32, #tpu.memory_space<vmem>>, %arg9: memref<32x128xf32, #tpu.memory_space<vmem>>, %arg10: memref<32x32xf32, #tpu.memory_space<vmem>>) attributes {dimension_semantics = [#tpu.dimension_semantics<arbitrary>], iteration_bounds = array<i64: 1>, scalar_prefetch = 0 : i64, scratch_operands = 4 : i64, tpu.core_type = #tpu.core_type<tc>, window_params = [{transform_indices = @transform_0, window_bounds = array<i64: 32, 32>}, {pipeline_mode = #tpu.pipeline_mode<synchronous>, transform_indices = @transform_1, window_bounds = array<i64: 32, 128>}, {pipeline_mode = #tpu.pipeline_mode<synchronous>, transform_indices = @transform_2, window_bounds = array<i64: 32, 128>}, {pipeline_mode = #tpu.pipeline_mode<synchronous>, transform_indices = @transform_3, window_bounds = array<i64: 32, 2>}, {pipeline_mode = #tpu.pipeline_mode<synchronous>, transform_indices = @transform_4, window_bounds = array<i64: 1, 2>}, {transform_indices = @transform_5, window_bounds = array<i64: 32, 2>}]} {
    %c0_i32 = arith.constant 0 : i32
    %0 = arith.cmpi eq, %arg0, %c0_i32 : i32
    %1 = arith.extui %0 : i1 to i32
    %c0_i32_0 = arith.constant 0 : i32
    %2 = arith.cmpi ne, %1, %c0_i32_0 : i32
    scf.if %2 {
      %cst_168 = arith.constant 0.000000e+00 : f32
      %546 = vector.broadcast %cst_168 : f32 to vector<2x32xf32>
      %c0_169 = arith.constant 0 : index
      %c0_170 = arith.constant 0 : index
      %547 = vector.load %arg7[%c0_169, %c0_170] : memref<2x32xf32, #tpu.memory_space<vmem>>, vector<2x32xf32>
      tpu.vector_store %arg7[%c0_169, %c0_170], %546 {strides = array<i32>} : memref<2x32xf32, #tpu.memory_space<vmem>>, vector<2x32xf32>,
      %cst_171 = arith.constant 0.000000e+00 : f32
      %548 = vector.broadcast %cst_171 : f32 to vector<2x32xf32>
      %c0_172 = arith.constant 0 : index
      %c0_173 = arith.constant 0 : index
      %549 = vector.load %arg8[%c0_172, %c0_173] : memref<2x32xf32, #tpu.memory_space<vmem>>, vector<2x32xf32>
      tpu.vector_store %arg8[%c0_172, %c0_173], %548 {strides = array<i32>} : memref<2x32xf32, #tpu.memory_space<vmem>>, vector<2x32xf32>,
    } else {
    }
    %c0 = arith.constant 0 : index
    %c0_1 = arith.constant 0 : index
    %3 = vector.load %arg1[%c0, %c0_1] : memref<32x32xf32, #tpu.memory_space<vmem>>, vector<32x32xf32>
    %c0_2 = arith.constant 0 : index
    %c0_3 = arith.constant 0 : index
    %4 = vector.load %arg2[%c0_2, %c0_3] : memref<32x128xf32, #tpu.memory_space<vmem>>, vector<32x128xf32>
    %cst = arith.constant dense<0.000000e+00> : vector<32x128xf32>
    %5 = tpu.matmul %3, %4, %cst {dimension_numbers = #tpu.dot_dimension_numbers<[1], [0], [0], [1], [0, 0, 1, 1], [], []>} : vector<32x32xf32>, vector<32x128xf32>, vector<32x128xf32> -> vector<32x128xf32>
    %c0_4 = arith.constant 0 : index
    %c0_5 = arith.constant 0 : index
    %6 = vector.load %arg9[%c0_4, %c0_5] : memref<32x128xf32, #tpu.memory_space<vmem>>, vector<32x128xf32>
    tpu.vector_store %arg9[%c0_4, %c0_5], %5 {strides = array<i32>} : memref<32x128xf32, #tpu.memory_space<vmem>>, vector<32x128xf32>,
    %c0_6 = arith.constant 0 : index
    %c0_7 = arith.constant 0 : index
    %7 = vector.load %arg7[%c0_6, %c0_7] : memref<2x32xf32, #tpu.memory_space<vmem>>, vector<2x32xf32>
    %c0_8 = arith.constant 0 : index
    %c0_9 = arith.constant 0 : index
    %8 = vector.load %arg8[%c0_8, %c0_9] : memref<2x32xf32, #tpu.memory_space<vmem>>, vector<2x32xf32>
    %c0_i32_10 = arith.constant 0 : i32
    %c2_i32 = arith.constant 2 : i32
    %9 = arith.muli %c0_i32_10, %c2_i32 : i32
    %10 = arith.index_cast %9 : i32 to index
    %c0_11 = arith.constant 0 : index
    %11 = vector.load %arg9[%10, %c0_11] : memref<32x128xf32, #tpu.memory_space<vmem>>, vector<2x128xf32>
    %c0_12 = arith.constant 0 : index
    %c0_13 = arith.constant 0 : index
    %12 = vector.load %arg3[%c0_12, %c0_13] : memref<32x128xf32, #tpu.memory_space<vmem>>, vector<32x128xf32>
    %cst_14 = arith.constant dense<0.000000e+00> : vector<2x128xf32>
    %13 = tpu.matmul %7, %12, %cst_14 {dimension_numbers = #tpu.dot_dimension_numbers<[1], [0], [0], [1], [0, 0, 1, 1], [], []>} : vector<2x32xf32>, vector<32x128xf32>, vector<2x128xf32> -> vector<2x128xf32>
    %14 = arith.addf %11, %13 : vector<2x128xf32>
    %15 = vector.extract_strided_slice %14 {offsets = [0, 0], sizes = [2, 32], strides = [1, 1]} : vector<2x128xf32> to vector<2x32xf32>
    %16 = arith.negf %15 : vector<2x32xf32>
    %17 = math.exp %16 : vector<2x32xf32>
    %cst_15 = arith.constant 1.000000e+00 : f32
    %18 = vector.broadcast %cst_15 : f32 to vector<2x32xf32>
    %19 = arith.addf %18, %17 : vector<2x32xf32>
    %20 = arith.divf %18, %19 : vector<2x32xf32>
    %21 = vector.extract_strided_slice %14 {offsets = [0, 32], sizes = [2, 32], strides = [1, 1]} : vector<2x128xf32> to vector<2x32xf32>
    %22 = arith.negf %21 : vector<2x32xf32>
    %23 = math.exp %22 : vector<2x32xf32>
    %cst_16 = arith.constant 1.000000e+00 : f32
    %24 = vector.broadcast %cst_16 : f32 to vector<2x32xf32>
    %25 = arith.addf %24, %23 : vector<2x32xf32>
    %26 = arith.divf %24, %25 : vector<2x32xf32>
    %27 = vector.extract_strided_slice %14 {offsets = [0, 64], sizes = [2, 32], strides = [1, 1]} : vector<2x128xf32> to vector<2x32xf32>
    %28 = math.tanh %27 : vector<2x32xf32>
    %29 = vector.extract_strided_slice %14 {offsets = [0, 96], sizes = [2, 32], strides = [1, 1]} : vector<2x128xf32> to vector<2x32xf32>
    %30 = arith.negf %29 : vector<2x32xf32>
    %31 = math.exp %30 : vector<2x32xf32>
    %cst_17 = arith.constant 1.000000e+00 : f32
    %32 = vector.broadcast %cst_17 : f32 to vector<2x32xf32>
    %33 = arith.addf %32, %31 : vector<2x32xf32>
    %34 = arith.divf %32, %33 : vector<2x32xf32>
    %35 = arith.mulf %26, %8 : vector<2x32xf32>
    %36 = arith.mulf %20, %28 : vector<2x32xf32>
    %37 = arith.addf %35, %36 : vector<2x32xf32>
    %38 = math.tanh %37 : vector<2x32xf32>
    %39 = arith.mulf %34, %38 : vector<2x32xf32>
    %40 = arith.index_cast %9 : i32 to index
    %c0_18 = arith.constant 0 : index
    %41 = vector.load %arg10[%40, %c0_18] : memref<32x32xf32, #tpu.memory_space<vmem>>, vector<2x32xf32>
    tpu.vector_store %arg10[%40, %c0_18], %39 {strides = array<i32>} : memref<32x32xf32, #tpu.memory_space<vmem>>, vector<2x32xf32>,
    %c1_i32 = arith.constant 1 : i32
    %c2_i32_19 = arith.constant 2 : i32
    %42 = arith.muli %c1_i32, %c2_i32_19 : i32
    %43 = arith.index_cast %42 : i32 to index
    %c0_20 = arith.constant 0 : index
    %44 = vector.load %arg9[%43, %c0_20] : memref<32x128xf32, #tpu.memory_space<vmem>>, vector<2x128xf32>
    %c0_21 = arith.constant 0 : index
    %c0_22 = arith.constant 0 : index
    %45 = vector.load %arg3[%c0_21, %c0_22] : memref<32x128xf32, #tpu.memory_space<vmem>>, vector<32x128xf32>
    %cst_23 = arith.constant dense<0.000000e+00> : vector<2x128xf32>
    %46 = tpu.matmul %39, %45, %cst_23 {dimension_numbers = #tpu.dot_dimension_numbers<[1], [0], [0], [1], [0, 0, 1, 1], [], []>} : vector<2x32xf32>, vector<32x128xf32>, vector<2x128xf32> -> vector<2x128xf32>
    %47 = arith.addf %44, %46 : vector<2x128xf32>
    %48 = vector.extract_strided_slice %47 {offsets = [0, 0], sizes = [2, 32], strides = [1, 1]} : vector<2x128xf32> to vector<2x32xf32>
    %49 = arith.negf %48 : vector<2x32xf32>
    %50 = math.exp %49 : vector<2x32xf32>
    %cst_24 = arith.constant 1.000000e+00 : f32
    %51 = vector.broadcast %cst_24 : f32 to vector<2x32xf32>
    %52 = arith.addf %51, %50 : vector<2x32xf32>
    %53 = arith.divf %51, %52 : vector<2x32xf32>
    %54 = vector.extract_strided_slice %47 {offsets = [0, 32], sizes = [2, 32], strides = [1, 1]} : vector<2x128xf32> to vector<2x32xf32>
    %55 = arith.negf %54 : vector<2x32xf32>
    %56 = math.exp %55 : vector<2x32xf32>
    %cst_25 = arith.constant 1.000000e+00 : f32
    %57 = vector.broadcast %cst_25 : f32 to vector<2x32xf32>
    %58 = arith.addf %57, %56 : vector<2x32xf32>
    %59 = arith.divf %57, %58 : vector<2x32xf32>
    %60 = vector.extract_strided_slice %47 {offsets = [0, 64], sizes = [2, 32], strides = [1, 1]} : vector<2x128xf32> to vector<2x32xf32>
    %61 = math.tanh %60 : vector<2x32xf32>
    %62 = vector.extract_strided_slice %47 {offsets = [0, 96], sizes = [2, 32], strides = [1, 1]} : vector<2x128xf32> to vector<2x32xf32>
    %63 = arith.negf %62 : vector<2x32xf32>
    %64 = math.exp %63 : vector<2x32xf32>
    %cst_26 = arith.constant 1.000000e+00 : f32
    %65 = vector.broadcast %cst_26 : f32 to vector<2x32xf32>
    %66 = arith.addf %65, %64 : vector<2x32xf32>
    %67 = arith.divf %65, %66 : vector<2x32xf32>
    %68 = arith.mulf %59, %37 : vector<2x32xf32>
    %69 = arith.mulf %53, %61 : vector<2x32xf32>
    %70 = arith.addf %68, %69 : vector<2x32xf32>
    %71 = math.tanh %70 : vector<2x32xf32>
    %72 = arith.mulf %67, %71 : vector<2x32xf32>
    %73 = arith.index_cast %42 : i32 to index
    %c0_27 = arith.constant 0 : index
    %74 = vector.load %arg10[%73, %c0_27] : memref<32x32xf32, #tpu.memory_space<vmem>>, vector<2x32xf32>
    tpu.vector_store %arg10[%73, %c0_27], %72 {strides = array<i32>} : memref<32x32xf32, #tpu.memory_space<vmem>>, vector<2x32xf32>,
    %c2_i32_28 = arith.constant 2 : i32
    %c2_i32_29 = arith.constant 2 : i32
    %75 = arith.muli %c2_i32_28, %c2_i32_29 : i32
    %76 = arith.index_cast %75 : i32 to index
    %c0_30 = arith.constant 0 : index
    %77 = vector.load %arg9[%76, %c0_30] : memref<32x128xf32, #tpu.memory_space<vmem>>, vector<2x128xf32>
    %c0_31 = arith.constant 0 : index
    %c0_32 = arith.constant 0 : index
    %78 = vector.load %arg3[%c0_31, %c0_32] : memref<32x128xf32, #tpu.memory_space<vmem>>, vector<32x128xf32>
    %cst_33 = arith.constant dense<0.000000e+00> : vector<2x128xf32>
    %79 = tpu.matmul %72, %78, %cst_33 {dimension_numbers = #tpu.dot_dimension_numbers<[1], [0], [0], [1], [0, 0, 1, 1], [], []>} : vector<2x32xf32>, vector<32x128xf32>, vector<2x128xf32> -> vector<2x128xf32>
    %80 = arith.addf %77, %79 : vector<2x128xf32>
    %81 = vector.extract_strided_slice %80 {offsets = [0, 0], sizes = [2, 32], strides = [1, 1]} : vector<2x128xf32> to vector<2x32xf32>
    %82 = arith.negf %81 : vector<2x32xf32>
    %83 = math.exp %82 : vector<2x32xf32>
    %cst_34 = arith.constant 1.000000e+00 : f32
    %84 = vector.broadcast %cst_34 : f32 to vector<2x32xf32>
    %85 = arith.addf %84, %83 : vector<2x32xf32>
    %86 = arith.divf %84, %85 : vector<2x32xf32>
    %87 = vector.extract_strided_slice %80 {offsets = [0, 32], sizes = [2, 32], strides = [1, 1]} : vector<2x128xf32> to vector<2x32xf32>
    %88 = arith.negf %87 : vector<2x32xf32>
    %89 = math.exp %88 : vector<2x32xf32>
    %cst_35 = arith.constant 1.000000e+00 : f32
    %90 = vector.broadcast %cst_35 : f32 to vector<2x32xf32>
    %91 = arith.addf %90, %89 : vector<2x32xf32>
    %92 = arith.divf %90, %91 : vector<2x32xf32>
    %93 = vector.extract_strided_slice %80 {offsets = [0, 64], sizes = [2, 32], strides = [1, 1]} : vector<2x128xf32> to vector<2x32xf32>
    %94 = math.tanh %93 : vector<2x32xf32>
    %95 = vector.extract_strided_slice %80 {offsets = [0, 96], sizes = [2, 32], strides = [1, 1]} : vector<2x128xf32> to vector<2x32xf32>
    %96 = arith.negf %95 : vector<2x32xf32>
    %97 = math.exp %96 : vector<2x32xf32>
    %cst_36 = arith.constant 1.000000e+00 : f32
    %98 = vector.broadcast %cst_36 : f32 to vector<2x32xf32>
    %99 = arith.addf %98, %97 : vector<2x32xf32>
    %100 = arith.divf %98, %99 : vector<2x32xf32>
    %101 = arith.mulf %92, %70 : vector<2x32xf32>
    %102 = arith.mulf %86, %94 : vector<2x32xf32>
    %103 = arith.addf %101, %102 : vector<2x32xf32>
    %104 = math.tanh %103 : vector<2x32xf32>
    %105 = arith.mulf %100, %104 : vector<2x32xf32>
    %106 = arith.index_cast %75 : i32 to index
    %c0_37 = arith.constant 0 : index
    %107 = vector.load %arg10[%106, %c0_37] : memref<32x32xf32, #tpu.memory_space<vmem>>, vector<2x32xf32>
    tpu.vector_store %arg10[%106, %c0_37], %105 {strides = array<i32>} : memref<32x32xf32, #tpu.memory_space<vmem>>, vector<2x32xf32>,
    %c3_i32 = arith.constant 3 : i32
    %c2_i32_38 = arith.constant 2 : i32
    %108 = arith.muli %c3_i32, %c2_i32_38 : i32
    %109 = arith.index_cast %108 : i32 to index
    %c0_39 = arith.constant 0 : index
    %110 = vector.load %arg9[%109, %c0_39] : memref<32x128xf32, #tpu.memory_space<vmem>>, vector<2x128xf32>
    %c0_40 = arith.constant 0 : index
    %c0_41 = arith.constant 0 : index
    %111 = vector.load %arg3[%c0_40, %c0_41] : memref<32x128xf32, #tpu.memory_space<vmem>>, vector<32x128xf32>
    %cst_42 = arith.constant dense<0.000000e+00> : vector<2x128xf32>
    %112 = tpu.matmul %105, %111, %cst_42 {dimension_numbers = #tpu.dot_dimension_numbers<[1], [0], [0], [1], [0, 0, 1, 1], [], []>} : vector<2x32xf32>, vector<32x128xf32>, vector<2x128xf32> -> vector<2x128xf32>
    %113 = arith.addf %110, %112 : vector<2x128xf32>
    %114 = vector.extract_strided_slice %113 {offsets = [0, 0], sizes = [2, 32], strides = [1, 1]} : vector<2x128xf32> to vector<2x32xf32>
    %115 = arith.negf %114 : vector<2x32xf32>
    %116 = math.exp %115 : vector<2x32xf32>
    %cst_43 = arith.constant 1.000000e+00 : f32
    %117 = vector.broadcast %cst_43 : f32 to vector<2x32xf32>
    %118 = arith.addf %117, %116 : vector<2x32xf32>
    %119 = arith.divf %117, %118 : vector<2x32xf32>
    %120 = vector.extract_strided_slice %113 {offsets = [0, 32], sizes = [2, 32], strides = [1, 1]} : vector<2x128xf32> to vector<2x32xf32>
    %121 = arith.negf %120 : vector<2x32xf32>
    %122 = math.exp %121 : vector<2x32xf32>
    %cst_44 = arith.constant 1.000000e+00 : f32
    %123 = vector.broadcast %cst_44 : f32 to vector<2x32xf32>
    %124 = arith.addf %123, %122 : vector<2x32xf32>
    %125 = arith.divf %123, %124 : vector<2x32xf32>
    %126 = vector.extract_strided_slice %113 {offsets = [0, 64], sizes = [2, 32], strides = [1, 1]} : vector<2x128xf32> to vector<2x32xf32>
    %127 = math.tanh %126 : vector<2x32xf32>
    %128 = vector.extract_strided_slice %113 {offsets = [0, 96], sizes = [2, 32], strides = [1, 1]} : vector<2x128xf32> to vector<2x32xf32>
    %129 = arith.negf %128 : vector<2x32xf32>
    %130 = math.exp %129 : vector<2x32xf32>
    %cst_45 = arith.constant 1.000000e+00 : f32
    %131 = vector.broadcast %cst_45 : f32 to vector<2x32xf32>
    %132 = arith.addf %131, %130 : vector<2x32xf32>
    %133 = arith.divf %131, %132 : vector<2x32xf32>
    %134 = arith.mulf %125, %103 : vector<2x32xf32>
    %135 = arith.mulf %119, %127 : vector<2x32xf32>
    %136 = arith.addf %134, %135 : vector<2x32xf32>
    %137 = math.tanh %136 : vector<2x32xf32>
    %138 = arith.mulf %133, %137 : vector<2x32xf32>
    %139 = arith.index_cast %108 : i32 to index
    %c0_46 = arith.constant 0 : index
    %140 = vector.load %arg10[%139, %c0_46] : memref<32x32xf32, #tpu.memory_space<vmem>>, vector<2x32xf32>
    tpu.vector_store %arg10[%139, %c0_46], %138 {strides = array<i32>} : memref<32x32xf32, #tpu.memory_space<vmem>>, vector<2x32xf32>,
    %c4_i32 = arith.constant 4 : i32
    %c2_i32_47 = arith.constant 2 : i32
    %141 = arith.muli %c4_i32, %c2_i32_47 : i32
    %142 = arith.index_cast %141 : i32 to index
    %c0_48 = arith.constant 0 : index
    %143 = vector.load %arg9[%142, %c0_48] : memref<32x128xf32, #tpu.memory_space<vmem>>, vector<2x128xf32>
    %c0_49 = arith.constant 0 : index
    %c0_50 = arith.constant 0 : index
    %144 = vector.load %arg3[%c0_49, %c0_50] : memref<32x128xf32, #tpu.memory_space<vmem>>, vector<32x128xf32>
    %cst_51 = arith.constant dense<0.000000e+00> : vector<2x128xf32>
    %145 = tpu.matmul %138, %144, %cst_51 {dimension_numbers = #tpu.dot_dimension_numbers<[1], [0], [0], [1], [0, 0, 1, 1], [], []>} : vector<2x32xf32>, vector<32x128xf32>, vector<2x128xf32> -> vector<2x128xf32>
    %146 = arith.addf %143, %145 : vector<2x128xf32>
    %147 = vector.extract_strided_slice %146 {offsets = [0, 0], sizes = [2, 32], strides = [1, 1]} : vector<2x128xf32> to vector<2x32xf32>
    %148 = arith.negf %147 : vector<2x32xf32>
    %149 = math.exp %148 : vector<2x32xf32>
    %cst_52 = arith.constant 1.000000e+00 : f32
    %150 = vector.broadcast %cst_52 : f32 to vector<2x32xf32>
    %151 = arith.addf %150, %149 : vector<2x32xf32>
    %152 = arith.divf %150, %151 : vector<2x32xf32>
    %153 = vector.extract_strided_slice %146 {offsets = [0, 32], sizes = [2, 32], strides = [1, 1]} : vector<2x128xf32> to vector<2x32xf32>
    %154 = arith.negf %153 : vector<2x32xf32>
    %155 = math.exp %154 : vector<2x32xf32>
    %cst_53 = arith.constant 1.000000e+00 : f32
    %156 = vector.broadcast %cst_53 : f32 to vector<2x32xf32>
    %157 = arith.addf %156, %155 : vector<2x32xf32>
    %158 = arith.divf %156, %157 : vector<2x32xf32>
    %159 = vector.extract_strided_slice %146 {offsets = [0, 64], sizes = [2, 32], strides = [1, 1]} : vector<2x128xf32> to vector<2x32xf32>
    %160 = math.tanh %159 : vector<2x32xf32>
    %161 = vector.extract_strided_slice %146 {offsets = [0, 96], sizes = [2, 32], strides = [1, 1]} : vector<2x128xf32> to vector<2x32xf32>
    %162 = arith.negf %161 : vector<2x32xf32>
    %163 = math.exp %162 : vector<2x32xf32>
    %cst_54 = arith.constant 1.000000e+00 : f32
    %164 = vector.broadcast %cst_54 : f32 to vector<2x32xf32>
    %165 = arith.addf %164, %163 : vector<2x32xf32>
    %166 = arith.divf %164, %165 : vector<2x32xf32>
    %167 = arith.mulf %158, %136 : vector<2x32xf32>
    %168 = arith.mulf %152, %160 : vector<2x32xf32>
    %169 = arith.addf %167, %168 : vector<2x32xf32>
    %170 = math.tanh %169 : vector<2x32xf32>
    %171 = arith.mulf %166, %170 : vector<2x32xf32>
    %172 = arith.index_cast %141 : i32 to index
    %c0_55 = arith.constant 0 : index
    %173 = vector.load %arg10[%172, %c0_55] : memref<32x32xf32, #tpu.memory_space<vmem>>, vector<2x32xf32>
    tpu.vector_store %arg10[%172, %c0_55], %171 {strides = array<i32>} : memref<32x32xf32, #tpu.memory_space<vmem>>, vector<2x32xf32>,
    %c5_i32 = arith.constant 5 : i32
    %c2_i32_56 = arith.constant 2 : i32
    %174 = arith.muli %c5_i32, %c2_i32_56 : i32
    %175 = arith.index_cast %174 : i32 to index
    %c0_57 = arith.constant 0 : index
    %176 = vector.load %arg9[%175, %c0_57] : memref<32x128xf32, #tpu.memory_space<vmem>>, vector<2x128xf32>
    %c0_58 = arith.constant 0 : index
    %c0_59 = arith.constant 0 : index
    %177 = vector.load %arg3[%c0_58, %c0_59] : memref<32x128xf32, #tpu.memory_space<vmem>>, vector<32x128xf32>
    %cst_60 = arith.constant dense<0.000000e+00> : vector<2x128xf32>
    %178 = tpu.matmul %171, %177, %cst_60 {dimension_numbers = #tpu.dot_dimension_numbers<[1], [0], [0], [1], [0, 0, 1, 1], [], []>} : vector<2x32xf32>, vector<32x128xf32>, vector<2x128xf32> -> vector<2x128xf32>
    %179 = arith.addf %176, %178 : vector<2x128xf32>
    %180 = vector.extract_strided_slice %179 {offsets = [0, 0], sizes = [2, 32], strides = [1, 1]} : vector<2x128xf32> to vector<2x32xf32>
    %181 = arith.negf %180 : vector<2x32xf32>
    %182 = math.exp %181 : vector<2x32xf32>
    %cst_61 = arith.constant 1.000000e+00 : f32
    %183 = vector.broadcast %cst_61 : f32 to vector<2x32xf32>
    %184 = arith.addf %183, %182 : vector<2x32xf32>
    %185 = arith.divf %183, %184 : vector<2x32xf32>
    %186 = vector.extract_strided_slice %179 {offsets = [0, 32], sizes = [2, 32], strides = [1, 1]} : vector<2x128xf32> to vector<2x32xf32>
    %187 = arith.negf %186 : vector<2x32xf32>
    %188 = math.exp %187 : vector<2x32xf32>
    %cst_62 = arith.constant 1.000000e+00 : f32
    %189 = vector.broadcast %cst_62 : f32 to vector<2x32xf32>
    %190 = arith.addf %189, %188 : vector<2x32xf32>
    %191 = arith.divf %189, %190 : vector<2x32xf32>
    %192 = vector.extract_strided_slice %179 {offsets = [0, 64], sizes = [2, 32], strides = [1, 1]} : vector<2x128xf32> to vector<2x32xf32>
    %193 = math.tanh %192 : vector<2x32xf32>
    %194 = vector.extract_strided_slice %179 {offsets = [0, 96], sizes = [2, 32], strides = [1, 1]} : vector<2x128xf32> to vector<2x32xf32>
    %195 = arith.negf %194 : vector<2x32xf32>
    %196 = math.exp %195 : vector<2x32xf32>
    %cst_63 = arith.constant 1.000000e+00 : f32
    %197 = vector.broadcast %cst_63 : f32 to vector<2x32xf32>
    %198 = arith.addf %197, %196 : vector<2x32xf32>
    %199 = arith.divf %197, %198 : vector<2x32xf32>
    %200 = arith.mulf %191, %169 : vector<2x32xf32>
    %201 = arith.mulf %185, %193 : vector<2x32xf32>
    %202 = arith.addf %200, %201 : vector<2x32xf32>
    %203 = math.tanh %202 : vector<2x32xf32>
    %204 = arith.mulf %199, %203 : vector<2x32xf32>
    %205 = arith.index_cast %174 : i32 to index
    %c0_64 = arith.constant 0 : index
    %206 = vector.load %arg10[%205, %c0_64] : memref<32x32xf32, #tpu.memory_space<vmem>>, vector<2x32xf32>
    tpu.vector_store %arg10[%205, %c0_64], %204 {strides = array<i32>} : memref<32x32xf32, #tpu.memory_space<vmem>>, vector<2x32xf32>,
    %c6_i32 = arith.constant 6 : i32
    %c2_i32_65 = arith.constant 2 : i32
    %207 = arith.muli %c6_i32, %c2_i32_65 : i32
    %208 = arith.index_cast %207 : i32 to index
    %c0_66 = arith.constant 0 : index
    %209 = vector.load %arg9[%208, %c0_66] : memref<32x128xf32, #tpu.memory_space<vmem>>, vector<2x128xf32>
    %c0_67 = arith.constant 0 : index
    %c0_68 = arith.constant 0 : index
    %210 = vector.load %arg3[%c0_67, %c0_68] : memref<32x128xf32, #tpu.memory_space<vmem>>, vector<32x128xf32>
    %cst_69 = arith.constant dense<0.000000e+00> : vector<2x128xf32>
    %211 = tpu.matmul %204, %210, %cst_69 {dimension_numbers = #tpu.dot_dimension_numbers<[1], [0], [0], [1], [0, 0, 1, 1], [], []>} : vector<2x32xf32>, vector<32x128xf32>, vector<2x128xf32> -> vector<2x128xf32>
    %212 = arith.addf %209, %211 : vector<2x128xf32>
    %213 = vector.extract_strided_slice %212 {offsets = [0, 0], sizes = [2, 32], strides = [1, 1]} : vector<2x128xf32> to vector<2x32xf32>
    %214 = arith.negf %213 : vector<2x32xf32>
    %215 = math.exp %214 : vector<2x32xf32>
    %cst_70 = arith.constant 1.000000e+00 : f32
    %216 = vector.broadcast %cst_70 : f32 to vector<2x32xf32>
    %217 = arith.addf %216, %215 : vector<2x32xf32>
    %218 = arith.divf %216, %217 : vector<2x32xf32>
    %219 = vector.extract_strided_slice %212 {offsets = [0, 32], sizes = [2, 32], strides = [1, 1]} : vector<2x128xf32> to vector<2x32xf32>
    %220 = arith.negf %219 : vector<2x32xf32>
    %221 = math.exp %220 : vector<2x32xf32>
    %cst_71 = arith.constant 1.000000e+00 : f32
    %222 = vector.broadcast %cst_71 : f32 to vector<2x32xf32>
    %223 = arith.addf %222, %221 : vector<2x32xf32>
    %224 = arith.divf %222, %223 : vector<2x32xf32>
    %225 = vector.extract_strided_slice %212 {offsets = [0, 64], sizes = [2, 32], strides = [1, 1]} : vector<2x128xf32> to vector<2x32xf32>
    %226 = math.tanh %225 : vector<2x32xf32>
    %227 = vector.extract_strided_slice %212 {offsets = [0, 96], sizes = [2, 32], strides = [1, 1]} : vector<2x128xf32> to vector<2x32xf32>
    %228 = arith.negf %227 : vector<2x32xf32>
    %229 = math.exp %228 : vector<2x32xf32>
    %cst_72 = arith.constant 1.000000e+00 : f32
    %230 = vector.broadcast %cst_72 : f32 to vector<2x32xf32>
    %231 = arith.addf %230, %229 : vector<2x32xf32>
    %232 = arith.divf %230, %231 : vector<2x32xf32>
    %233 = arith.mulf %224, %202 : vector<2x32xf32>
    %234 = arith.mulf %218, %226 : vector<2x32xf32>
    %235 = arith.addf %233, %234 : vector<2x32xf32>
    %236 = math.tanh %235 : vector<2x32xf32>
    %237 = arith.mulf %232, %236 : vector<2x32xf32>
    %238 = arith.index_cast %207 : i32 to index
    %c0_73 = arith.constant 0 : index
    %239 = vector.load %arg10[%238, %c0_73] : memref<32x32xf32, #tpu.memory_space<vmem>>, vector<2x32xf32>
    tpu.vector_store %arg10[%238, %c0_73], %237 {strides = array<i32>} : memref<32x32xf32, #tpu.memory_space<vmem>>, vector<2x32xf32>,
    %c7_i32 = arith.constant 7 : i32
    %c2_i32_74 = arith.constant 2 : i32
    %240 = arith.muli %c7_i32, %c2_i32_74 : i32
    %241 = arith.index_cast %240 : i32 to index
    %c0_75 = arith.constant 0 : index
    %242 = vector.load %arg9[%241, %c0_75] : memref<32x128xf32, #tpu.memory_space<vmem>>, vector<2x128xf32>
    %c0_76 = arith.constant 0 : index
    %c0_77 = arith.constant 0 : index
    %243 = vector.load %arg3[%c0_76, %c0_77] : memref<32x128xf32, #tpu.memory_space<vmem>>, vector<32x128xf32>
    %cst_78 = arith.constant dense<0.000000e+00> : vector<2x128xf32>
    %244 = tpu.matmul %237, %243, %cst_78 {dimension_numbers = #tpu.dot_dimension_numbers<[1], [0], [0], [1], [0, 0, 1, 1], [], []>} : vector<2x32xf32>, vector<32x128xf32>, vector<2x128xf32> -> vector<2x128xf32>
    %245 = arith.addf %242, %244 : vector<2x128xf32>
    %246 = vector.extract_strided_slice %245 {offsets = [0, 0], sizes = [2, 32], strides = [1, 1]} : vector<2x128xf32> to vector<2x32xf32>
    %247 = arith.negf %246 : vector<2x32xf32>
    %248 = math.exp %247 : vector<2x32xf32>
    %cst_79 = arith.constant 1.000000e+00 : f32
    %249 = vector.broadcast %cst_79 : f32 to vector<2x32xf32>
    %250 = arith.addf %249, %248 : vector<2x32xf32>
    %251 = arith.divf %249, %250 : vector<2x32xf32>
    %252 = vector.extract_strided_slice %245 {offsets = [0, 32], sizes = [2, 32], strides = [1, 1]} : vector<2x128xf32> to vector<2x32xf32>
    %253 = arith.negf %252 : vector<2x32xf32>
    %254 = math.exp %253 : vector<2x32xf32>
    %cst_80 = arith.constant 1.000000e+00 : f32
    %255 = vector.broadcast %cst_80 : f32 to vector<2x32xf32>
    %256 = arith.addf %255, %254 : vector<2x32xf32>
    %257 = arith.divf %255, %256 : vector<2x32xf32>
    %258 = vector.extract_strided_slice %245 {offsets = [0, 64], sizes = [2, 32], strides = [1, 1]} : vector<2x128xf32> to vector<2x32xf32>
    %259 = math.tanh %258 : vector<2x32xf32>
    %260 = vector.extract_strided_slice %245 {offsets = [0, 96], sizes = [2, 32], strides = [1, 1]} : vector<2x128xf32> to vector<2x32xf32>
    %261 = arith.negf %260 : vector<2x32xf32>
    %262 = math.exp %261 : vector<2x32xf32>
    %cst_81 = arith.constant 1.000000e+00 : f32
    %263 = vector.broadcast %cst_81 : f32 to vector<2x32xf32>
    %264 = arith.addf %263, %262 : vector<2x32xf32>
    %265 = arith.divf %263, %264 : vector<2x32xf32>
    %266 = arith.mulf %257, %235 : vector<2x32xf32>
    %267 = arith.mulf %251, %259 : vector<2x32xf32>
    %268 = arith.addf %266, %267 : vector<2x32xf32>
    %269 = math.tanh %268 : vector<2x32xf32>
    %270 = arith.mulf %265, %269 : vector<2x32xf32>
    %271 = arith.index_cast %240 : i32 to index
    %c0_82 = arith.constant 0 : index
    %272 = vector.load %arg10[%271, %c0_82] : memref<32x32xf32, #tpu.memory_space<vmem>>, vector<2x32xf32>
    tpu.vector_store %arg10[%271, %c0_82], %270 {strides = array<i32>} : memref<32x32xf32, #tpu.memory_space<vmem>>, vector<2x32xf32>,
    %c8_i32 = arith.constant 8 : i32
    %c2_i32_83 = arith.constant 2 : i32
    %273 = arith.muli %c8_i32, %c2_i32_83 : i32
    %274 = arith.index_cast %273 : i32 to index
    %c0_84 = arith.constant 0 : index
    %275 = vector.load %arg9[%274, %c0_84] : memref<32x128xf32, #tpu.memory_space<vmem>>, vector<2x128xf32>
    %c0_85 = arith.constant 0 : index
    %c0_86 = arith.constant 0 : index
    %276 = vector.load %arg3[%c0_85, %c0_86] : memref<32x128xf32, #tpu.memory_space<vmem>>, vector<32x128xf32>
    %cst_87 = arith.constant dense<0.000000e+00> : vector<2x128xf32>
    %277 = tpu.matmul %270, %276, %cst_87 {dimension_numbers = #tpu.dot_dimension_numbers<[1], [0], [0], [1], [0, 0, 1, 1], [], []>} : vector<2x32xf32>, vector<32x128xf32>, vector<2x128xf32> -> vector<2x128xf32>
    %278 = arith.addf %275, %277 : vector<2x128xf32>
    %279 = vector.extract_strided_slice %278 {offsets = [0, 0], sizes = [2, 32], strides = [1, 1]} : vector<2x128xf32> to vector<2x32xf32>
    %280 = arith.negf %279 : vector<2x32xf32>
    %281 = math.exp %280 : vector<2x32xf32>
    %cst_88 = arith.constant 1.000000e+00 : f32
    %282 = vector.broadcast %cst_88 : f32 to vector<2x32xf32>
    %283 = arith.addf %282, %281 : vector<2x32xf32>
    %284 = arith.divf %282, %283 : vector<2x32xf32>
    %285 = vector.extract_strided_slice %278 {offsets = [0, 32], sizes = [2, 32], strides = [1, 1]} : vector<2x128xf32> to vector<2x32xf32>
    %286 = arith.negf %285 : vector<2x32xf32>
    %287 = math.exp %286 : vector<2x32xf32>
    %cst_89 = arith.constant 1.000000e+00 : f32
    %288 = vector.broadcast %cst_89 : f32 to vector<2x32xf32>
    %289 = arith.addf %288, %287 : vector<2x32xf32>
    %290 = arith.divf %288, %289 : vector<2x32xf32>
    %291 = vector.extract_strided_slice %278 {offsets = [0, 64], sizes = [2, 32], strides = [1, 1]} : vector<2x128xf32> to vector<2x32xf32>
    %292 = math.tanh %291 : vector<2x32xf32>
    %293 = vector.extract_strided_slice %278 {offsets = [0, 96], sizes = [2, 32], strides = [1, 1]} : vector<2x128xf32> to vector<2x32xf32>
    %294 = arith.negf %293 : vector<2x32xf32>
    %295 = math.exp %294 : vector<2x32xf32>
    %cst_90 = arith.constant 1.000000e+00 : f32
    %296 = vector.broadcast %cst_90 : f32 to vector<2x32xf32>
    %297 = arith.addf %296, %295 : vector<2x32xf32>
    %298 = arith.divf %296, %297 : vector<2x32xf32>
    %299 = arith.mulf %290, %268 : vector<2x32xf32>
    %300 = arith.mulf %284, %292 : vector<2x32xf32>
    %301 = arith.addf %299, %300 : vector<2x32xf32>
    %302 = math.tanh %301 : vector<2x32xf32>
    %303 = arith.mulf %298, %302 : vector<2x32xf32>
    %304 = arith.index_cast %273 : i32 to index
    %c0_91 = arith.constant 0 : index
    %305 = vector.load %arg10[%304, %c0_91] : memref<32x32xf32, #tpu.memory_space<vmem>>, vector<2x32xf32>
    tpu.vector_store %arg10[%304, %c0_91], %303 {strides = array<i32>} : memref<32x32xf32, #tpu.memory_space<vmem>>, vector<2x32xf32>,
    %c9_i32 = arith.constant 9 : i32
    %c2_i32_92 = arith.constant 2 : i32
    %306 = arith.muli %c9_i32, %c2_i32_92 : i32
    %307 = arith.index_cast %306 : i32 to index
    %c0_93 = arith.constant 0 : index
    %308 = vector.load %arg9[%307, %c0_93] : memref<32x128xf32, #tpu.memory_space<vmem>>, vector<2x128xf32>
    %c0_94 = arith.constant 0 : index
    %c0_95 = arith.constant 0 : index
    %309 = vector.load %arg3[%c0_94, %c0_95] : memref<32x128xf32, #tpu.memory_space<vmem>>, vector<32x128xf32>
    %cst_96 = arith.constant dense<0.000000e+00> : vector<2x128xf32>
    %310 = tpu.matmul %303, %309, %cst_96 {dimension_numbers = #tpu.dot_dimension_numbers<[1], [0], [0], [1], [0, 0, 1, 1], [], []>} : vector<2x32xf32>, vector<32x128xf32>, vector<2x128xf32> -> vector<2x128xf32>
    %311 = arith.addf %308, %310 : vector<2x128xf32>
    %312 = vector.extract_strided_slice %311 {offsets = [0, 0], sizes = [2, 32], strides = [1, 1]} : vector<2x128xf32> to vector<2x32xf32>
    %313 = arith.negf %312 : vector<2x32xf32>
    %314 = math.exp %313 : vector<2x32xf32>
    %cst_97 = arith.constant 1.000000e+00 : f32
    %315 = vector.broadcast %cst_97 : f32 to vector<2x32xf32>
    %316 = arith.addf %315, %314 : vector<2x32xf32>
    %317 = arith.divf %315, %316 : vector<2x32xf32>
    %318 = vector.extract_strided_slice %311 {offsets = [0, 32], sizes = [2, 32], strides = [1, 1]} : vector<2x128xf32> to vector<2x32xf32>
    %319 = arith.negf %318 : vector<2x32xf32>
    %320 = math.exp %319 : vector<2x32xf32>
    %cst_98 = arith.constant 1.000000e+00 : f32
    %321 = vector.broadcast %cst_98 : f32 to vector<2x32xf32>
    %322 = arith.addf %321, %320 : vector<2x32xf32>
    %323 = arith.divf %321, %322 : vector<2x32xf32>
    %324 = vector.extract_strided_slice %311 {offsets = [0, 64], sizes = [2, 32], strides = [1, 1]} : vector<2x128xf32> to vector<2x32xf32>
    %325 = math.tanh %324 : vector<2x32xf32>
    %326 = vector.extract_strided_slice %311 {offsets = [0, 96], sizes = [2, 32], strides = [1, 1]} : vector<2x128xf32> to vector<2x32xf32>
    %327 = arith.negf %326 : vector<2x32xf32>
    %328 = math.exp %327 : vector<2x32xf32>
    %cst_99 = arith.constant 1.000000e+00 : f32
    %329 = vector.broadcast %cst_99 : f32 to vector<2x32xf32>
    %330 = arith.addf %329, %328 : vector<2x32xf32>
    %331 = arith.divf %329, %330 : vector<2x32xf32>
    %332 = arith.mulf %323, %301 : vector<2x32xf32>
    %333 = arith.mulf %317, %325 : vector<2x32xf32>
    %334 = arith.addf %332, %333 : vector<2x32xf32>
    %335 = math.tanh %334 : vector<2x32xf32>
    %336 = arith.mulf %331, %335 : vector<2x32xf32>
    %337 = arith.index_cast %306 : i32 to index
    %c0_100 = arith.constant 0 : index
    %338 = vector.load %arg10[%337, %c0_100] : memref<32x32xf32, #tpu.memory_space<vmem>>, vector<2x32xf32>
    tpu.vector_store %arg10[%337, %c0_100], %336 {strides = array<i32>} : memref<32x32xf32, #tpu.memory_space<vmem>>, vector<2x32xf32>,
    %c10_i32 = arith.constant 10 : i32
    %c2_i32_101 = arith.constant 2 : i32
    %339 = arith.muli %c10_i32, %c2_i32_101 : i32
    %340 = arith.index_cast %339 : i32 to index
    %c0_102 = arith.constant 0 : index
    %341 = vector.load %arg9[%340, %c0_102] : memref<32x128xf32, #tpu.memory_space<vmem>>, vector<2x128xf32>
    %c0_103 = arith.constant 0 : index
    %c0_104 = arith.constant 0 : index
    %342 = vector.load %arg3[%c0_103, %c0_104] : memref<32x128xf32, #tpu.memory_space<vmem>>, vector<32x128xf32>
    %cst_105 = arith.constant dense<0.000000e+00> : vector<2x128xf32>
    %343 = tpu.matmul %336, %342, %cst_105 {dimension_numbers = #tpu.dot_dimension_numbers<[1], [0], [0], [1], [0, 0, 1, 1], [], []>} : vector<2x32xf32>, vector<32x128xf32>, vector<2x128xf32> -> vector<2x128xf32>
    %344 = arith.addf %341, %343 : vector<2x128xf32>
    %345 = vector.extract_strided_slice %344 {offsets = [0, 0], sizes = [2, 32], strides = [1, 1]} : vector<2x128xf32> to vector<2x32xf32>
    %346 = arith.negf %345 : vector<2x32xf32>
    %347 = math.exp %346 : vector<2x32xf32>
    %cst_106 = arith.constant 1.000000e+00 : f32
    %348 = vector.broadcast %cst_106 : f32 to vector<2x32xf32>
    %349 = arith.addf %348, %347 : vector<2x32xf32>
    %350 = arith.divf %348, %349 : vector<2x32xf32>
    %351 = vector.extract_strided_slice %344 {offsets = [0, 32], sizes = [2, 32], strides = [1, 1]} : vector<2x128xf32> to vector<2x32xf32>
    %352 = arith.negf %351 : vector<2x32xf32>
    %353 = math.exp %352 : vector<2x32xf32>
    %cst_107 = arith.constant 1.000000e+00 : f32
    %354 = vector.broadcast %cst_107 : f32 to vector<2x32xf32>
    %355 = arith.addf %354, %353 : vector<2x32xf32>
    %356 = arith.divf %354, %355 : vector<2x32xf32>
    %357 = vector.extract_strided_slice %344 {offsets = [0, 64], sizes = [2, 32], strides = [1, 1]} : vector<2x128xf32> to vector<2x32xf32>
    %358 = math.tanh %357 : vector<2x32xf32>
    %359 = vector.extract_strided_slice %344 {offsets = [0, 96], sizes = [2, 32], strides = [1, 1]} : vector<2x128xf32> to vector<2x32xf32>
    %360 = arith.negf %359 : vector<2x32xf32>
    %361 = math.exp %360 : vector<2x32xf32>
    %cst_108 = arith.constant 1.000000e+00 : f32
    %362 = vector.broadcast %cst_108 : f32 to vector<2x32xf32>
    %363 = arith.addf %362, %361 : vector<2x32xf32>
    %364 = arith.divf %362, %363 : vector<2x32xf32>
    %365 = arith.mulf %356, %334 : vector<2x32xf32>
    %366 = arith.mulf %350, %358 : vector<2x32xf32>
    %367 = arith.addf %365, %366 : vector<2x32xf32>
    %368 = math.tanh %367 : vector<2x32xf32>
    %369 = arith.mulf %364, %368 : vector<2x32xf32>
    %370 = arith.index_cast %339 : i32 to index
    %c0_109 = arith.constant 0 : index
    %371 = vector.load %arg10[%370, %c0_109] : memref<32x32xf32, #tpu.memory_space<vmem>>, vector<2x32xf32>
    tpu.vector_store %arg10[%370, %c0_109], %369 {strides = array<i32>} : memref<32x32xf32, #tpu.memory_space<vmem>>, vector<2x32xf32>,
    %c11_i32 = arith.constant 11 : i32
    %c2_i32_110 = arith.constant 2 : i32
    %372 = arith.muli %c11_i32, %c2_i32_110 : i32
    %373 = arith.index_cast %372 : i32 to index
    %c0_111 = arith.constant 0 : index
    %374 = vector.load %arg9[%373, %c0_111] : memref<32x128xf32, #tpu.memory_space<vmem>>, vector<2x128xf32>
    %c0_112 = arith.constant 0 : index
    %c0_113 = arith.constant 0 : index
    %375 = vector.load %arg3[%c0_112, %c0_113] : memref<32x128xf32, #tpu.memory_space<vmem>>, vector<32x128xf32>
    %cst_114 = arith.constant dense<0.000000e+00> : vector<2x128xf32>
    %376 = tpu.matmul %369, %375, %cst_114 {dimension_numbers = #tpu.dot_dimension_numbers<[1], [0], [0], [1], [0, 0, 1, 1], [], []>} : vector<2x32xf32>, vector<32x128xf32>, vector<2x128xf32> -> vector<2x128xf32>
    %377 = arith.addf %374, %376 : vector<2x128xf32>
    %378 = vector.extract_strided_slice %377 {offsets = [0, 0], sizes = [2, 32], strides = [1, 1]} : vector<2x128xf32> to vector<2x32xf32>
    %379 = arith.negf %378 : vector<2x32xf32>
    %380 = math.exp %379 : vector<2x32xf32>
    %cst_115 = arith.constant 1.000000e+00 : f32
    %381 = vector.broadcast %cst_115 : f32 to vector<2x32xf32>
    %382 = arith.addf %381, %380 : vector<2x32xf32>
    %383 = arith.divf %381, %382 : vector<2x32xf32>
    %384 = vector.extract_strided_slice %377 {offsets = [0, 32], sizes = [2, 32], strides = [1, 1]} : vector<2x128xf32> to vector<2x32xf32>
    %385 = arith.negf %384 : vector<2x32xf32>
    %386 = math.exp %385 : vector<2x32xf32>
    %cst_116 = arith.constant 1.000000e+00 : f32
    %387 = vector.broadcast %cst_116 : f32 to vector<2x32xf32>
    %388 = arith.addf %387, %386 : vector<2x32xf32>
    %389 = arith.divf %387, %388 : vector<2x32xf32>
    %390 = vector.extract_strided_slice %377 {offsets = [0, 64], sizes = [2, 32], strides = [1, 1]} : vector<2x128xf32> to vector<2x32xf32>
    %391 = math.tanh %390 : vector<2x32xf32>
    %392 = vector.extract_strided_slice %377 {offsets = [0, 96], sizes = [2, 32], strides = [1, 1]} : vector<2x128xf32> to vector<2x32xf32>
    %393 = arith.negf %392 : vector<2x32xf32>
    %394 = math.exp %393 : vector<2x32xf32>
    %cst_117 = arith.constant 1.000000e+00 : f32
    %395 = vector.broadcast %cst_117 : f32 to vector<2x32xf32>
    %396 = arith.addf %395, %394 : vector<2x32xf32>
    %397 = arith.divf %395, %396 : vector<2x32xf32>
    %398 = arith.mulf %389, %367 : vector<2x32xf32>
    %399 = arith.mulf %383, %391 : vector<2x32xf32>
    %400 = arith.addf %398, %399 : vector<2x32xf32>
    %401 = math.tanh %400 : vector<2x32xf32>
    %402 = arith.mulf %397, %401 : vector<2x32xf32>
    %403 = arith.index_cast %372 : i32 to index
    %c0_118 = arith.constant 0 : index
    %404 = vector.load %arg10[%403, %c0_118] : memref<32x32xf32, #tpu.memory_space<vmem>>, vector<2x32xf32>
    tpu.vector_store %arg10[%403, %c0_118], %402 {strides = array<i32>} : memref<32x32xf32, #tpu.memory_space<vmem>>, vector<2x32xf32>,
    %c12_i32 = arith.constant 12 : i32
    %c2_i32_119 = arith.constant 2 : i32
    %405 = arith.muli %c12_i32, %c2_i32_119 : i32
    %406 = arith.index_cast %405 : i32 to index
    %c0_120 = arith.constant 0 : index
    %407 = vector.load %arg9[%406, %c0_120] : memref<32x128xf32, #tpu.memory_space<vmem>>, vector<2x128xf32>
    %c0_121 = arith.constant 0 : index
    %c0_122 = arith.constant 0 : index
    %408 = vector.load %arg3[%c0_121, %c0_122] : memref<32x128xf32, #tpu.memory_space<vmem>>, vector<32x128xf32>
    %cst_123 = arith.constant dense<0.000000e+00> : vector<2x128xf32>
    %409 = tpu.matmul %402, %408, %cst_123 {dimension_numbers = #tpu.dot_dimension_numbers<[1], [0], [0], [1], [0, 0, 1, 1], [], []>} : vector<2x32xf32>, vector<32x128xf32>, vector<2x128xf32> -> vector<2x128xf32>
    %410 = arith.addf %407, %409 : vector<2x128xf32>
    %411 = vector.extract_strided_slice %410 {offsets = [0, 0], sizes = [2, 32], strides = [1, 1]} : vector<2x128xf32> to vector<2x32xf32>
    %412 = arith.negf %411 : vector<2x32xf32>
    %413 = math.exp %412 : vector<2x32xf32>
    %cst_124 = arith.constant 1.000000e+00 : f32
    %414 = vector.broadcast %cst_124 : f32 to vector<2x32xf32>
    %415 = arith.addf %414, %413 : vector<2x32xf32>
    %416 = arith.divf %414, %415 : vector<2x32xf32>
    %417 = vector.extract_strided_slice %410 {offsets = [0, 32], sizes = [2, 32], strides = [1, 1]} : vector<2x128xf32> to vector<2x32xf32>
    %418 = arith.negf %417 : vector<2x32xf32>
    %419 = math.exp %418 : vector<2x32xf32>
    %cst_125 = arith.constant 1.000000e+00 : f32
    %420 = vector.broadcast %cst_125 : f32 to vector<2x32xf32>
    %421 = arith.addf %420, %419 : vector<2x32xf32>
    %422 = arith.divf %420, %421 : vector<2x32xf32>
    %423 = vector.extract_strided_slice %410 {offsets = [0, 64], sizes = [2, 32], strides = [1, 1]} : vector<2x128xf32> to vector<2x32xf32>
    %424 = math.tanh %423 : vector<2x32xf32>
    %425 = vector.extract_strided_slice %410 {offsets = [0, 96], sizes = [2, 32], strides = [1, 1]} : vector<2x128xf32> to vector<2x32xf32>
    %426 = arith.negf %425 : vector<2x32xf32>
    %427 = math.exp %426 : vector<2x32xf32>
    %cst_126 = arith.constant 1.000000e+00 : f32
    %428 = vector.broadcast %cst_126 : f32 to vector<2x32xf32>
    %429 = arith.addf %428, %427 : vector<2x32xf32>
    %430 = arith.divf %428, %429 : vector<2x32xf32>
    %431 = arith.mulf %422, %400 : vector<2x32xf32>
    %432 = arith.mulf %416, %424 : vector<2x32xf32>
    %433 = arith.addf %431, %432 : vector<2x32xf32>
    %434 = math.tanh %433 : vector<2x32xf32>
    %435 = arith.mulf %430, %434 : vector<2x32xf32>
    %436 = arith.index_cast %405 : i32 to index
    %c0_127 = arith.constant 0 : index
    %437 = vector.load %arg10[%436, %c0_127] : memref<32x32xf32, #tpu.memory_space<vmem>>, vector<2x32xf32>
    tpu.vector_store %arg10[%436, %c0_127], %435 {strides = array<i32>} : memref<32x32xf32, #tpu.memory_space<vmem>>, vector<2x32xf32>,
    %c13_i32 = arith.constant 13 : i32
    %c2_i32_128 = arith.constant 2 : i32
    %438 = arith.muli %c13_i32, %c2_i32_128 : i32
    %439 = arith.index_cast %438 : i32 to index
    %c0_129 = arith.constant 0 : index
    %440 = vector.load %arg9[%439, %c0_129] : memref<32x128xf32, #tpu.memory_space<vmem>>, vector<2x128xf32>
    %c0_130 = arith.constant 0 : index
    %c0_131 = arith.constant 0 : index
    %441 = vector.load %arg3[%c0_130, %c0_131] : memref<32x128xf32, #tpu.memory_space<vmem>>, vector<32x128xf32>
    %cst_132 = arith.constant dense<0.000000e+00> : vector<2x128xf32>
    %442 = tpu.matmul %435, %441, %cst_132 {dimension_numbers = #tpu.dot_dimension_numbers<[1], [0], [0], [1], [0, 0, 1, 1], [], []>} : vector<2x32xf32>, vector<32x128xf32>, vector<2x128xf32> -> vector<2x128xf32>
    %443 = arith.addf %440, %442 : vector<2x128xf32>
    %444 = vector.extract_strided_slice %443 {offsets = [0, 0], sizes = [2, 32], strides = [1, 1]} : vector<2x128xf32> to vector<2x32xf32>
    %445 = arith.negf %444 : vector<2x32xf32>
    %446 = math.exp %445 : vector<2x32xf32>
    %cst_133 = arith.constant 1.000000e+00 : f32
    %447 = vector.broadcast %cst_133 : f32 to vector<2x32xf32>
    %448 = arith.addf %447, %446 : vector<2x32xf32>
    %449 = arith.divf %447, %448 : vector<2x32xf32>
    %450 = vector.extract_strided_slice %443 {offsets = [0, 32], sizes = [2, 32], strides = [1, 1]} : vector<2x128xf32> to vector<2x32xf32>
    %451 = arith.negf %450 : vector<2x32xf32>
    %452 = math.exp %451 : vector<2x32xf32>
    %cst_134 = arith.constant 1.000000e+00 : f32
    %453 = vector.broadcast %cst_134 : f32 to vector<2x32xf32>
    %454 = arith.addf %453, %452 : vector<2x32xf32>
    %455 = arith.divf %453, %454 : vector<2x32xf32>
    %456 = vector.extract_strided_slice %443 {offsets = [0, 64], sizes = [2, 32], strides = [1, 1]} : vector<2x128xf32> to vector<2x32xf32>
    %457 = math.tanh %456 : vector<2x32xf32>
    %458 = vector.extract_strided_slice %443 {offsets = [0, 96], sizes = [2, 32], strides = [1, 1]} : vector<2x128xf32> to vector<2x32xf32>
    %459 = arith.negf %458 : vector<2x32xf32>
    %460 = math.exp %459 : vector<2x32xf32>
    %cst_135 = arith.constant 1.000000e+00 : f32
    %461 = vector.broadcast %cst_135 : f32 to vector<2x32xf32>
    %462 = arith.addf %461, %460 : vector<2x32xf32>
    %463 = arith.divf %461, %462 : vector<2x32xf32>
    %464 = arith.mulf %455, %433 : vector<2x32xf32>
    %465 = arith.mulf %449, %457 : vector<2x32xf32>
    %466 = arith.addf %464, %465 : vector<2x32xf32>
    %467 = math.tanh %466 : vector<2x32xf32>
    %468 = arith.mulf %463, %467 : vector<2x32xf32>
    %469 = arith.index_cast %438 : i32 to index
    %c0_136 = arith.constant 0 : index
    %470 = vector.load %arg10[%469, %c0_136] : memref<32x32xf32, #tpu.memory_space<vmem>>, vector<2x32xf32>
    tpu.vector_store %arg10[%469, %c0_136], %468 {strides = array<i32>} : memref<32x32xf32, #tpu.memory_space<vmem>>, vector<2x32xf32>,
    %c14_i32 = arith.constant 14 : i32
    %c2_i32_137 = arith.constant 2 : i32
    %471 = arith.muli %c14_i32, %c2_i32_137 : i32
    %472 = arith.index_cast %471 : i32 to index
    %c0_138 = arith.constant 0 : index
    %473 = vector.load %arg9[%472, %c0_138] : memref<32x128xf32, #tpu.memory_space<vmem>>, vector<2x128xf32>
    %c0_139 = arith.constant 0 : index
    %c0_140 = arith.constant 0 : index
    %474 = vector.load %arg3[%c0_139, %c0_140] : memref<32x128xf32, #tpu.memory_space<vmem>>, vector<32x128xf32>
    %cst_141 = arith.constant dense<0.000000e+00> : vector<2x128xf32>
    %475 = tpu.matmul %468, %474, %cst_141 {dimension_numbers = #tpu.dot_dimension_numbers<[1], [0], [0], [1], [0, 0, 1, 1], [], []>} : vector<2x32xf32>, vector<32x128xf32>, vector<2x128xf32> -> vector<2x128xf32>
    %476 = arith.addf %473, %475 : vector<2x128xf32>
    %477 = vector.extract_strided_slice %476 {offsets = [0, 0], sizes = [2, 32], strides = [1, 1]} : vector<2x128xf32> to vector<2x32xf32>
    %478 = arith.negf %477 : vector<2x32xf32>
    %479 = math.exp %478 : vector<2x32xf32>
    %cst_142 = arith.constant 1.000000e+00 : f32
    %480 = vector.broadcast %cst_142 : f32 to vector<2x32xf32>
    %481 = arith.addf %480, %479 : vector<2x32xf32>
    %482 = arith.divf %480, %481 : vector<2x32xf32>
    %483 = vector.extract_strided_slice %476 {offsets = [0, 32], sizes = [2, 32], strides = [1, 1]} : vector<2x128xf32> to vector<2x32xf32>
    %484 = arith.negf %483 : vector<2x32xf32>
    %485 = math.exp %484 : vector<2x32xf32>
    %cst_143 = arith.constant 1.000000e+00 : f32
    %486 = vector.broadcast %cst_143 : f32 to vector<2x32xf32>
    %487 = arith.addf %486, %485 : vector<2x32xf32>
    %488 = arith.divf %486, %487 : vector<2x32xf32>
    %489 = vector.extract_strided_slice %476 {offsets = [0, 64], sizes = [2, 32], strides = [1, 1]} : vector<2x128xf32> to vector<2x32xf32>
    %490 = math.tanh %489 : vector<2x32xf32>
    %491 = vector.extract_strided_slice %476 {offsets = [0, 96], sizes = [2, 32], strides = [1, 1]} : vector<2x128xf32> to vector<2x32xf32>
    %492 = arith.negf %491 : vector<2x32xf32>
    %493 = math.exp %492 : vector<2x32xf32>
    %cst_144 = arith.constant 1.000000e+00 : f32
    %494 = vector.broadcast %cst_144 : f32 to vector<2x32xf32>
    %495 = arith.addf %494, %493 : vector<2x32xf32>
    %496 = arith.divf %494, %495 : vector<2x32xf32>
    %497 = arith.mulf %488, %466 : vector<2x32xf32>
    %498 = arith.mulf %482, %490 : vector<2x32xf32>
    %499 = arith.addf %497, %498 : vector<2x32xf32>
    %500 = math.tanh %499 : vector<2x32xf32>
    %501 = arith.mulf %496, %500 : vector<2x32xf32>
    %502 = arith.index_cast %471 : i32 to index
    %c0_145 = arith.constant 0 : index
    %503 = vector.load %arg10[%502, %c0_145] : memref<32x32xf32, #tpu.memory_space<vmem>>, vector<2x32xf32>
    tpu.vector_store %arg10[%502, %c0_145], %501 {strides = array<i32>} : memref<32x32xf32, #tpu.memory_space<vmem>>, vector<2x32xf32>,
    %c15_i32 = arith.constant 15 : i32
    %c2_i32_146 = arith.constant 2 : i32
    %504 = arith.muli %c15_i32, %c2_i32_146 : i32
    %505 = arith.index_cast %504 : i32 to index
    %c0_147 = arith.constant 0 : index
    %506 = vector.load %arg9[%505, %c0_147] : memref<32x128xf32, #tpu.memory_space<vmem>>, vector<2x128xf32>
    %c0_148 = arith.constant 0 : index
    %c0_149 = arith.constant 0 : index
    %507 = vector.load %arg3[%c0_148, %c0_149] : memref<32x128xf32, #tpu.memory_space<vmem>>, vector<32x128xf32>
    %cst_150 = arith.constant dense<0.000000e+00> : vector<2x128xf32>
    %508 = tpu.matmul %501, %507, %cst_150 {dimension_numbers = #tpu.dot_dimension_numbers<[1], [0], [0], [1], [0, 0, 1, 1], [], []>} : vector<2x32xf32>, vector<32x128xf32>, vector<2x128xf32> -> vector<2x128xf32>
    %509 = arith.addf %506, %508 : vector<2x128xf32>
    %510 = vector.extract_strided_slice %509 {offsets = [0, 0], sizes = [2, 32], strides = [1, 1]} : vector<2x128xf32> to vector<2x32xf32>
    %511 = arith.negf %510 : vector<2x32xf32>
    %512 = math.exp %511 : vector<2x32xf32>
    %cst_151 = arith.constant 1.000000e+00 : f32
    %513 = vector.broadcast %cst_151 : f32 to vector<2x32xf32>
    %514 = arith.addf %513, %512 : vector<2x32xf32>
    %515 = arith.divf %513, %514 : vector<2x32xf32>
    %516 = vector.extract_strided_slice %509 {offsets = [0, 32], sizes = [2, 32], strides = [1, 1]} : vector<2x128xf32> to vector<2x32xf32>
    %517 = arith.negf %516 : vector<2x32xf32>
    %518 = math.exp %517 : vector<2x32xf32>
    %cst_152 = arith.constant 1.000000e+00 : f32
    %519 = vector.broadcast %cst_152 : f32 to vector<2x32xf32>
    %520 = arith.addf %519, %518 : vector<2x32xf32>
    %521 = arith.divf %519, %520 : vector<2x32xf32>
    %522 = vector.extract_strided_slice %509 {offsets = [0, 64], sizes = [2, 32], strides = [1, 1]} : vector<2x128xf32> to vector<2x32xf32>
    %523 = math.tanh %522 : vector<2x32xf32>
    %524 = vector.extract_strided_slice %509 {offsets = [0, 96], sizes = [2, 32], strides = [1, 1]} : vector<2x128xf32> to vector<2x32xf32>
    %525 = arith.negf %524 : vector<2x32xf32>
    %526 = math.exp %525 : vector<2x32xf32>
    %cst_153 = arith.constant 1.000000e+00 : f32
    %527 = vector.broadcast %cst_153 : f32 to vector<2x32xf32>
    %528 = arith.addf %527, %526 : vector<2x32xf32>
    %529 = arith.divf %527, %528 : vector<2x32xf32>
    %530 = arith.mulf %521, %499 : vector<2x32xf32>
    %531 = arith.mulf %515, %523 : vector<2x32xf32>
    %532 = arith.addf %530, %531 : vector<2x32xf32>
    %533 = math.tanh %532 : vector<2x32xf32>
    %534 = arith.mulf %529, %533 : vector<2x32xf32>
    %535 = arith.index_cast %504 : i32 to index
    %c0_154 = arith.constant 0 : index
    %536 = vector.load %arg10[%535, %c0_154] : memref<32x32xf32, #tpu.memory_space<vmem>>, vector<2x32xf32>
    tpu.vector_store %arg10[%535, %c0_154], %534 {strides = array<i32>} : memref<32x32xf32, #tpu.memory_space<vmem>>, vector<2x32xf32>,
    %c16_i32 = arith.constant 16 : i32
    %c0_155 = arith.constant 0 : index
    %c0_156 = arith.constant 0 : index
    %537 = vector.load %arg7[%c0_155, %c0_156] : memref<2x32xf32, #tpu.memory_space<vmem>>, vector<2x32xf32>
    tpu.vector_store %arg7[%c0_155, %c0_156], %534 {strides = array<i32>} : memref<2x32xf32, #tpu.memory_space<vmem>>, vector<2x32xf32>,
    %c0_157 = arith.constant 0 : index
    %c0_158 = arith.constant 0 : index
    %538 = vector.load %arg8[%c0_157, %c0_158] : memref<2x32xf32, #tpu.memory_space<vmem>>, vector<2x32xf32>
    tpu.vector_store %arg8[%c0_157, %c0_158], %532 {strides = array<i32>} : memref<2x32xf32, #tpu.memory_space<vmem>>, vector<2x32xf32>,
    %c0_159 = arith.constant 0 : index
    %c0_160 = arith.constant 0 : index
    %539 = vector.load %arg10[%c0_159, %c0_160] : memref<32x32xf32, #tpu.memory_space<vmem>>, vector<32x32xf32>
    %c0_161 = arith.constant 0 : index
    %c0_162 = arith.constant 0 : index
    %540 = vector.load %arg4[%c0_161, %c0_162] : memref<32x2xf32, #tpu.memory_space<vmem>>, vector<32x2xf32>
    %cst_163 = arith.constant dense<0.000000e+00> : vector<32x2xf32>
    %541 = tpu.matmul %539, %540, %cst_163 {dimension_numbers = #tpu.dot_dimension_numbers<[1], [0], [0], [1], [0, 0, 1, 1], [], []>} : vector<32x32xf32>, vector<32x2xf32>, vector<32x2xf32> -> vector<32x2xf32>
    %c0_164 = arith.constant 0 : index
    %c0_165 = arith.constant 0 : index
    %542 = vector.load %arg5[%c0_164, %c0_165] : memref<1x2xf32, #tpu.memory_space<vmem>>, vector<1x2xf32>
    %543 = vector.broadcast %542 : vector<1x2xf32> to vector<32x2xf32>
    %544 = arith.addf %541, %543 : vector<32x2xf32>
    %c0_166 = arith.constant 0 : index
    %c0_167 = arith.constant 0 : index
    %545 = vector.load %arg6[%c0_166, %c0_167] : memref<32x2xf32, #tpu.memory_space<vmem>>, vector<32x2xf32>
    tpu.vector_store %arg6[%c0_166, %c0_167], %544 {strides = array<i32>} : memref<32x2xf32, #tpu.memory_space<vmem>>, vector<32x2xf32>,
    return
  }
  func.func @transform_0(%arg0: i32) -> (i32, i32) {
    %c0_i32 = arith.constant 0 : i32
    %c0_i32_0 = arith.constant 0 : i32
    return %arg0, %c0_i32 : i32, i32
  }
  func.func @transform_1(%arg0: i32) -> (i32, i32) {
    %c0_i32 = arith.constant 0 : i32
    %c0_i32_0 = arith.constant 0 : i32
    %c0_i32_1 = arith.constant 0 : i32
    return %c0_i32, %c0_i32_0 : i32, i32
  }
  func.func @transform_2(%arg0: i32) -> (i32, i32) {
    %c0_i32 = arith.constant 0 : i32
    %c0_i32_0 = arith.constant 0 : i32
    %c0_i32_1 = arith.constant 0 : i32
    return %c0_i32, %c0_i32_0 : i32, i32
  }
  func.func @transform_3(%arg0: i32) -> (i32, i32) {
    %c0_i32 = arith.constant 0 : i32
    %c0_i32_0 = arith.constant 0 : i32
    %c0_i32_1 = arith.constant 0 : i32
    return %c0_i32, %c0_i32_0 : i32, i32
  }
  func.func @transform_4(%arg0: i32) -> (i32, i32) {
    %c0_i32 = arith.constant 0 : i32
    %c0_i32_0 = arith.constant 0 : i32
    %c0_i32_1 = arith.constant 0 : i32
    return %c0_i32, %c0_i32_0 : i32, i32
  }
  func.func @transform_5(%arg0: i32) -> (i32, i32) {
    %c0_i32 = arith.constant 0 : i32
    %c0_i32_0 = arith.constant 0 : i32
    return %arg0, %c0_i32 : i32, i32
  }
}

</mosaic_0001>

<llo_original>
// kernel: tpu_custom_call.1
$region0: #{tpu_custom_call.1}
  #allocation0 [shape = 'u32[]', space=smem, size = 0x4, offset = 0x4, fixed_abs, tag = 'smem constant byte address 0x4 - core index']
  #allocation1 [shape = 'u32[144,128]{1,0:T(1,128)}', space=vmem, size = 0x12000, scoped, tag = 'internal scratch']
  #allocation2 [shape = 'f32[2,32]{1,0:T(2,128)}', space=vmem, size = 0x400, scoped, tag = 'scratch operand']
  #allocation3 [shape = 'f32[2,32]{1,0:T(2,128)}', space=vmem, size = 0x400, scoped, tag = 'scratch operand']
  #allocation4 [shape = 'f32[32,128]{1,0:T(8,128)}', space=vmem, size = 0x4000, scoped, tag = 'scratch operand']
  #allocation5 [shape = 'f32[32,32]{1,0:T(8,128)}', space=vmem, size = 0x4000, scoped, tag = 'scratch operand']
  %s0 = inlined_call_operand.vmem [shape: f32[32,32], index: 0, kind: input, shape index: {}]
  %s1 = inlined_call_operand.hbm [shape: f32[32,128], index: 1, kind: input, shape index: {}]
  %s2 = inlined_call_operand.hbm [shape: f32[32,128], index: 2, kind: input, shape index: {}]
  %s3 = inlined_call_operand.vmem [shape: f32[32,2], index: 3, kind: input, shape index: {}]
  %s4 = inlined_call_operand.vmem [shape: f32[1,2], index: 4, kind: input, shape index: {}]
  %s5 = inlined_call_operand.vmem [shape: f32[32,2], index: 5, kind: output, shape index: {}]
  %s6 = sld [smem:[#allocation0]]
  $region42: #{tpu_custom_call.1} parent=0
    _
  %s8 = ssub.s32 1, %s6
  %s9 = scalar_select 0, %s8, %s6
  $region1: #{tpu_custom_call.1} parent=0
    #allocation6 [shape = 'u8[16384]{0}', space=vmem, size = 0x4000, scoped, tag = 'input window, operand 1, single buffered']
    #allocation7 [shape = 's32[1]{0}', space=sflag, size = 0x4, scoped, tag = 'scoped memory for tpu_custom_call.1']
    #allocation8 [shape = 'u8[16384]{0}', space=vmem, size = 0x4000, scoped, tag = 'input window, operand 2, single buffered']
    #allocation9 [shape = 's32[1]{0}', space=sflag, size = 0x4, scoped, tag = 'scoped memory for tpu_custom_call.1']
    %10 = vsyncpa [#allocation7], 0
    %11 = vsyncpa [#allocation9], 0
    // Predicated region
    $region2: #{tpu_custom_call.1} parent=1 // pred_check
      _
    $region3: #{tpu_custom_call.1} parent=1 // pred_check_branch
      %13 = sbr.rel (0) target = $region5
    $region4: #{tpu_custom_call.1} parent=1 // pred_region
      _
    $region5: #{tpu_custom_call.1} parent=1 // pred_fallthru
      _
    // Predicated region
    $region6: #{tpu_custom_call.1} parent=1 // pred_check
      _
    $region7: #{tpu_custom_call.1} parent=1 // pred_check_branch
      %15 = sbr.rel (0) target = $region9
    $region8: #{tpu_custom_call.1} parent=1 // pred_region
      %s17 = ssub.s32 512, 512
      %18 = vsyncadd [#allocation7], %s17
      %s19 = sshll.u32 [#allocation6], 4
      %s20 = int_to_ptr.vmem [resolvable:$true] %s19
      %25 = dma.hbm_to_vmem [thread:$0]  %s1, 512, %s20, [#allocation7], 128, 128, 8
    $region9: #{tpu_custom_call.1} parent=1 // pred_fallthru
      _
    // Predicated region
    $region10: #{tpu_custom_call.1} parent=1 // pred_check
      _
    $region11: #{tpu_custom_call.1} parent=1 // pred_check_branch
      %27 = sbr.rel (0) target = $region13
    $region12: #{tpu_custom_call.1} parent=1 // pred_region
      %s29 = ssub.s32 512, 512
      %30 = vsyncadd [#allocation9], %s29
      %s31 = sshll.u32 [#allocation8], 4
      %s32 = int_to_ptr.vmem [resolvable:$true] %s31
      %37 = dma.hbm_to_vmem [thread:$0]  %s2, 512, %s32, [#allocation9], 128, 128, 8
    $region13: #{tpu_custom_call.1} parent=1 // pred_fallthru
      _
    // Predicated region
    $region14: #{tpu_custom_call.1} parent=1 // pred_check
      _
    $region15: #{tpu_custom_call.1} parent=1 // pred_check_branch
      %39 = sbr.rel (0) target = $region17
    $region16: #{tpu_custom_call.1} parent=1 // pred_region
      _
    $region17: #{tpu_custom_call.1} parent=1 // pred_fallthru
      _
    // Predicated region
    $region18: #{tpu_custom_call.1} parent=1 // pred_check
      _
    $region19: #{tpu_custom_call.1} parent=1 // pred_check_branch
      %41 = sbr.rel (0) target = $region21
    $region20: #{tpu_custom_call.1} parent=1 // pred_region
      _
    $region21: #{tpu_custom_call.1} parent=1 // pred_fallthru
      _
    // Predicated region
    $region22: #{tpu_custom_call.1} parent=1 // pred_check
      _
    $region23: #{tpu_custom_call.1} parent=1 // pred_check_branch
      %43 = sbr.rel (0) target = $region25
    $region24: #{tpu_custom_call.1} parent=1 // pred_region
      %44 = dma.done [#allocation7], 512
    $region25: #{tpu_custom_call.1} parent=1 // pred_fallthru
      _
    // Predicated region
    $region26: #{tpu_custom_call.1} parent=1 // pred_check
      _
    $region27: #{tpu_custom_call.1} parent=1 // pred_check_branch
      %46 = sbr.rel (0) target = $region29
    $region28: #{tpu_custom_call.1} parent=1 // pred_region
      %47 = dma.done [#allocation9], 512
    $region29: #{tpu_custom_call.1} parent=1 // pred_fallthru
      _
    %p48 = scmp.eq.s32.totalorder 0, 0
    // Predicated region
    $region30: #{tpu_custom_call.1} parent=1 // pred_check
      %p49 = pneg %p48
    $region31: #{tpu_custom_call.1} parent=1 // pred_check_branch
      %51 = sbr.rel (%p49) target = $region33
    $region32: #{tpu_custom_call.1} parent=1 // pred_region
      %vm52 = vcmask 254976
      %53 = vst.msk [vmem:[#allocation2] sm:$0x3] %vm52, 0.0
      %54 = vst.msk [vmem:[#allocation3] sm:$0x3] %vm52, 0.0
    $region33: #{tpu_custom_call.1} parent=1 // pred_fallthru
      _
    %v55 = vld [vmem:[%s0] sm:$0xff]
    %v56 = vld [vmem:[%s0 + $0x8] sm:$0xff]
    %v57 = vld [vmem:[%s0 + $0x10] sm:$0xff]
    %v58 = vld [vmem:[%s0 + $0x18] sm:$0xff]
    %v59 = vld [vmem:[#allocation6] sm:$0xff]
    %v60 = vld [vmem:[#allocation6 + $0x8] sm:$0xff]
    %v61 = vld [vmem:[#allocation6 + $0x10] sm:$0xff]
    %v62 = vld [vmem:[#allocation6 + $0x18] sm:$0xff]
    %vm63 = vcmask 261120
    %v65 = vsel %vm63, %v55, 0
    %v68 = vsel %vm63, %v56, 0
    %v71 = vsel %vm63, %v57, 0
    %v74 = vsel %vm63, %v58, 0
    %76 = vmatprep.subr.mxu0 0.0
    %77 = vmatpush1.msra.mxu0 %v59
    %78 = vmatprep.subr.mxu0 0.0
    %79 = vmatpush1.msra.mxu0 %v60
    %80 = vmatprep.subr.mxu0 0.0
    %81 = vmatpush1.msra.mxu0 %v61
    %82 = vmatprep.subr.mxu0 0.0
    %83 = vmatpush1.msra.mxu0 %v62
    %84 = vmatprep.subr.mxu0 0.0
    %85 = vmatpush1.msra.mxu0 0.0
    %86 = vmatprep.subr.mxu0 0.0
    %87 = vmatpush1.msra.mxu0 0.0
    %88 = vmatprep.subr.mxu0 0.0
    %89 = vmatpush1.msra.mxu0 0.0
    %90 = vmatprep.subr.mxu0 0.0
    %91 = vmatpush1.msra.mxu0 0.0
    %92 = vmatprep.subr.mxu0 0.0
    %93 = vmatpush1.msra.mxu0 0.0
    %94 = vmatprep.subr.mxu0 0.0
    %95 = vmatpush1.msra.mxu0 0.0
    %96 = vmatprep.subr.mxu0 0.0
    %97 = vmatpush1.msra.mxu0 0.0
    %98 = vmatprep.subr.mxu0 0.0
    %99 = vmatpush1.msra.mxu0 0.0
    %100 = vmatprep.subr.mxu0 0.0
    %101 = vmatpush1.msra.mxu0 0.0
    %102 = vmatprep.subr.mxu0 0.0
    %103 = vmatpush1.msra.mxu0 0.0
    %104 = vmatprep.subr.mxu0 0.0
    %105 = vmatpush1.msra.mxu0 0.0
    %106 = vmatprep.subr.mxu0 0.0
    %107 = vmatpush1.msra.mxu0 0.0
    %108 = vmatprep.subr.mxu0 0.0
    %109 = vmatpush1.msra.mxu0 0.0
    %110 = vmatprep.subr.mxu0 0.0
    %111 = vmatpush1.msra.mxu0 0.0
    %112 = vmatprep.subr.mxu0 0.0
    %113 = vmatpush1.msra.mxu0 0.0
    %114 = vmatprep.subr.mxu0 0.0
    %115 = vmatpush1.msra.mxu0 0.0
    %116 = vmatprep.subr.mxu0 0.0
    %117 = vmatpush1.msra.mxu0 0.0
    %118 = vmatprep.subr.mxu0 0.0
    %119 = vmatpush1.msra.mxu0 0.0
    %120 = vmatprep.subr.mxu0 0.0
    %121 = vmatpush1.msra.mxu0 0.0
    %122 = vmatprep.subr.mxu0 0.0
    %123 = vmatpush1.msra.mxu0 0.0
    %124 = vmatprep.subr.mxu0 0.0
    %125 = vmatpush1.msra.mxu0 0.0
    %126 = vmatprep.subr.mxu0 0.0
    %127 = vmatpush1.msra.mxu0 0.0
    %128 = vmatprep.subr.mxu0 0.0
    %129 = vmatpush1.msra.mxu0 0.0
    %130 = vmatprep.subr.mxu0 0.0
    %131 = vmatpush1.msra.mxu0 0.0
    %132 = vmatprep.subr.mxu0 0.0
    %133 = vmatpush1.msra.mxu0 0.0
    %134 = vmatprep.subr.mxu0 0.0
    %135 = vmatpush1.msra.mxu0 0.0
    %136 = vmatprep.subr.mxu0 0.0
    %137 = vmatpush1.msra.mxu0 0.0
    %138 = vmatprep.subr.mxu0 0.0
    %139 = vmatpush1.msra.mxu0 0.0
    %140 = vmatprep.mubr.f32.mxu0 0.0
    %141 = vmatmul.mubr.f32.gmra.mrb[0].mxu0 %v65
    %v142 = vpop.f32.mrb[0].mxu0
    %v143 = vadd.f32 0.0, %v142
    %v144 = vpop.f32.mrb[0].mxu0
    %145 = vmatprep.mubr.f32.mxu0 0.0
    %146 = vmatmul.mubr.f32.gmra.mrb[0].mxu0 %v68
    %v147 = vpop.f32.mrb[0].mxu0
    %v148 = vadd.f32 0.0, %v147
    %v149 = vpop.f32.mrb[0].mxu0
    %150 = vmatprep.mubr.f32.mxu0 0.0
    %151 = vmatmul.mubr.f32.gmra.mrb[0].mxu0 %v71
    %v152 = vpop.f32.mrb[0].mxu0
    %v153 = vadd.f32 0.0, %v152
    %v154 = vpop.f32.mrb[0].mxu0
    %155 = vmatprep.mubr.f32.mxu0 0.0
    %156 = vmatmul.mubr.f32.gmra.mrb[0].mxu0 %v74
    %v157 = vpop.f32.mrb[0].mxu0
    %v158 = vadd.f32 0.0, %v157
    %v159 = vpop.f32.mrb[0].mxu0
    %160 = vdwg.mxu0
    %161 = vst [vmem:[#allocation4] sm:$0xff] %v143
    %162 = vst [vmem:[#allocation4 + $0x8] sm:$0xff] %v148
    %163 = vst [vmem:[#allocation4 + $0x10] sm:$0xff] %v153
    %164 = vst [vmem:[#allocation4 + $0x18] sm:$0xff] %v158
    %v165 = vld [vmem:[#allocation2] sm:$0x3]
    %v166 = vld [vmem:[#allocation3] sm:$0x3]
    %v167 = vld [vmem:[#allocation4] sm:$0x3]
    %v168 = vld [vmem:[#allocation8] sm:$0xff]
    %v169 = vld [vmem:[#allocation8 + $0x8] sm:$0xff]
    %v170 = vld [vmem:[#allocation8 + $0x10] sm:$0xff]
    %v171 = vld [vmem:[#allocation8 + $0x18] sm:$0xff]
    %v173 = vsel %vm63, %v165, 0
    %175 = vmatprep.subr.mxu0 0.0
    %176 = vmatpush1.msra.mxu0 %v168
    %177 = vmatprep.subr.mxu0 0.0
    %178 = vmatpush1.msra.mxu0 %v169
    %179 = vmatprep.subr.mxu0 0.0
    %180 = vmatpush1.msra.mxu0 %v170
    %181 = vmatprep.subr.mxu0 0.0
    %182 = vmatpush1.msra.mxu0 %v171
    %183 = vmatprep.subr.mxu0 0.0
    %184 = vmatpush1.msra.mxu0 0.0
    %185 = vmatprep.subr.mxu0 0.0
    %186 = vmatpush1.msra.mxu0 0.0
    %187 = vmatprep.subr.mxu0 0.0
    %188 = vmatpush1.msra.mxu0 0.0
    %189 = vmatprep.subr.mxu0 0.0
    %190 = vmatpush1.msra.mxu0 0.0
    %191 = vmatprep.subr.mxu0 0.0
    %192 = vmatpush1.msra.mxu0 0.0
    %193 = vmatprep.subr.mxu0 0.0
    %194 = vmatpush1.msra.mxu0 0.0
    %195 = vmatprep.subr.mxu0 0.0
    %196 = vmatpush1.msra.mxu0 0.0
    %197 = vmatprep.subr.mxu0 0.0
    %198 = vmatpush1.msra.mxu0 0.0
    %199 = vmatprep.subr.mxu0 0.0
    %200 = vmatpush1.msra.mxu0 0.0
    %201 = vmatprep.subr.mxu0 0.0
    %202 = vmatpush1.msra.mxu0 0.0
    %203 = vmatprep.subr.mxu0 0.0
    %204 = vmatpush1.msra.mxu0 0.0
    %205 = vmatprep.subr.mxu0 0.0
    %206 = vmatpush1.msra.mxu0 0.0
    %207 = vmatprep.subr.mxu0 0.0
    %208 = vmatpush1.msra.mxu0 0.0
    %209 = vmatprep.subr.mxu0 0.0
    %210 = vmatpush1.msra.mxu0 0.0
    %211 = vmatprep.subr.mxu0 0.0
    %212 = vmatpush1.msra.mxu0 0.0
    %213 = vmatprep.subr.mxu0 0.0
    %214 = vmatpush1.msra.mxu0 0.0
    %215 = vmatprep.subr.mxu0 0.0
    %216 = vmatpush1.msra.mxu0 0.0
    %217 = vmatprep.subr.mxu0 0.0
    %218 = vmatpush1.msra.mxu0 0.0
    %219 = vmatprep.subr.mxu0 0.0
    %220 = vmatpush1.msra.mxu0 0.0
    %221 = vmatprep.subr.mxu0 0.0
    %222 = vmatpush1.msra.mxu0 0.0
    %223 = vmatprep.subr.mxu0 0.0
    %224 = vmatpush1.msra.mxu0 0.0
    %225 = vmatprep.subr.mxu0 0.0
    %226 = vmatpush1.msra.mxu0 0.0
    %227 = vmatprep.subr.mxu0 0.0
    %228 = vmatpush1.msra.mxu0 0.0
    %229 = vmatprep.subr.mxu0 0.0
    %230 = vmatpush1.msra.mxu0 0.0
    %231 = vmatprep.subr.mxu0 0.0
    %232 = vmatpush1.msra.mxu0 0.0
    %233 = vmatprep.subr.mxu0 0.0
    %234 = vmatpush1.msra.mxu0 0.0
    %235 = vmatprep.subr.mxu0 0.0
    %236 = vmatpush1.msra.mxu0 0.0
    %237 = vmatprep.subr.mxu0 0.0
    %238 = vmatpush1.msra.mxu0 0.0
    %239 = vmatprep.mubr.f32.mxu0 0.0
    %240 = vmatmul.mubr.f32.gmra.mrb[0].mxu0 %v173
    %v241 = vpop.f32.mrb[0].mxu0
    %v242 = vadd.f32 0.0, %v241
    %v243 = vpop.f32.mrb[0].mxu0
    %244 = vdwg.mxu0
    %v245 = vadd.f32 %v167, %v242
    %v246 = vxor.u32 %v245, 2147483648
    %v247 = vmul.f32 %v246, 1.442695
    %v248 = vpow.pop %v247
    %v249 = vadd.f32 %v248, 1.0
    %v250 = vrcp.pop %v249
    %v251 = vmul.f32 1.0, %v250
    %v252 = vtanh.pop %v245
    %254 = vrot.lane.b32.xlu0 %v166, 32
    %v255 = vpop.permute.xlu0 %254
    %v257 = vmul.f32 %v251, %v255
    %259 = vrot.lane.b32.xlu0 %v252, 64
    %v260 = vpop.permute.xlu0 %259
    %v262 = vmul.f32 %v251, %v260
    %264 = vrot.lane.b32.xlu0 %v262, 32
    %v265 = vpop.permute.xlu0 %264
    %v267 = vadd.f32 %v257, %v265
    %v268 = vtanh.pop %v267
    %270 = vrot.lane.b32.xlu0 %v268, 64
    %v271 = vpop.permute.xlu0 %270
    %v273 = vmul.f32 %v251, %v271
    %275 = vrot.lane.b32.xlu0 %v273, 32
    %v276 = vpop.permute.xlu0 %275
    %vm278 = vcmask 254976
    %279 = vst.msk [vmem:[#allocation5] sm:$0x3] %vm278, %v276
    %v280 = vld [vmem:[#allocation4 + $0x2] sm:$0x3]
    %v281 = vld [vmem:[#allocation8] sm:$0xff]
    %v282 = vld [vmem:[#allocation8 + $0x8] sm:$0xff]
    %v283 = vld [vmem:[#allocation8 + $0x10] sm:$0xff]
    %v284 = vld [vmem:[#allocation8 + $0x18] sm:$0xff]
    %v285 = vsel %vm63, %v276, 0
    %287 = vmatprep.subr.mxu0 0.0
    %288 = vmatpush1.msra.mxu0 %v281
    %289 = vmatprep.subr.mxu0 0.0
    %290 = vmatpush1.msra.mxu0 %v282
    %291 = vmatprep.subr.mxu0 0.0
    %292 = vmatpush1.msra.mxu0 %v283
    %293 = vmatprep.subr.mxu0 0.0
    %294 = vmatpush1.msra.mxu0 %v284
    %295 = vmatprep.subr.mxu0 0.0
    %296 = vmatpush1.msra.mxu0 0.0
    %297 = vmatprep.subr.mxu0 0.0
    %298 = vmatpush1.msra.mxu0 0.0
    %299 = vmatprep.subr.mxu0 0.0
    %300 = vmatpush1.msra.mxu0 0.0
    %301 = vmatprep.subr.mxu0 0.0
    %302 = vmatpush1.msra.mxu0 0.0
    %303 = vmatprep.subr.mxu0 0.0
    %304 = vmatpush1.msra.mxu0 0.0
    %305 = vmatprep.subr.mxu0 0.0
    %306 = vmatpush1.msra.mxu0 0.0
    %307 = vmatprep.subr.mxu0 0.0
    %308 = vmatpush1.msra.mxu0 0.0
    %309 = vmatprep.subr.mxu0 0.0
    %310 = vmatpush1.msra.mxu0 0.0
    %311 = vmatprep.subr.mxu0 0.0
    %312 = vmatpush1.msra.mxu0 0.0
    %313 = vmatprep.subr.mxu0 0.0
    %314 = vmatpush1.msra.mxu0 0.0
    %315 = vmatprep.subr.mxu0 0.0
    %316 = vmatpush1.msra.mxu0 0.0
    %317 = vmatprep.subr.mxu0 0.0
    %318 = vmatpush1.msra.mxu0 0.0
    %319 = vmatprep.subr.mxu0 0.0
    %320 = vmatpush1.msra.mxu0 0.0
    %321 = vmatprep.subr.mxu0 0.0
    %322 = vmatpush1.msra.mxu0 0.0
    %323 = vmatprep.subr.mxu0 0.0
    %324 = vmatpush1.msra.mxu0 0.0
    %325 = vmatprep.subr.mxu0 0.0
    %326 = vmatpush1.msra.mxu0 0.0
    %327 = vmatprep.subr.mxu0 0.0
    %328 = vmatpush1.msra.mxu0 0.0
    %329 = vmatprep.subr.mxu0 0.0
    %330 = vmatpush1.msra.mxu0 0.0
    %331 = vmatprep.subr.mxu0 0.0
    %332 = vmatpush1.msra.mxu0 0.0
    %333 = vmatprep.subr.mxu0 0.0
    %334 = vmatpush1.msra.mxu0 0.0
    %335 = vmatprep.subr.mxu0 0.0
    %336 = vmatpush1.msra.mxu0 0.0
    %337 = vmatprep.subr.mxu0 0.0
    %338 = vmatpush1.msra.mxu0 0.0
    %339 = vmatprep.subr.mxu0 0.0
    %340 = vmatpush1.msra.mxu0 0.0
    %341 = vmatprep.subr.mxu0 0.0
    %342 = vmatpush1.msra.mxu0 0.0
    %343 = vmatprep.subr.mxu0 0.0
    %344 = vmatpush1.msra.mxu0 0.0
    %345 = vmatprep.subr.mxu0 0.0
    %346 = vmatpush1.msra.mxu0 0.0
    %347 = vmatprep.subr.mxu0 0.0
    %348 = vmatpush1.msra.mxu0 0.0
    %349 = vmatprep.subr.mxu0 0.0
    %350 = vmatpush1.msra.mxu0 0.0
    %351 = vmatprep.mubr.f32.mxu0 0.0
    %352 = vmatmul.mubr.f32.gmra.mrb[0].mxu0 %v285
    %v353 = vpop.f32.mrb[0].mxu0
    %v354 = vadd.f32 0.0, %v353
    %v355 = vpop.f32.mrb[0].mxu0
    %356 = vdwg.mxu0
    %v357 = vadd.f32 %v280, %v354
    %v358 = vxor.u32 %v357, 2147483648
    %v359 = vmul.f32 %v358, 1.442695
    %v360 = vpow.pop %v359
    %v361 = vadd.f32 %v360, 1.0
    %v362 = vrcp.pop %v361
    %v363 = vmul.f32 1.0, %v362
    %v364 = vtanh.pop %v357
    %v365 = vmul.f32 %v363, %v267
    %367 = vrot.lane.b32.xlu0 %v364, 64
    %v368 = vpop.permute.xlu0 %367
    %v370 = vmul.f32 %v363, %v368
    %372 = vrot.lane.b32.xlu0 %v370, 32
    %v373 = vpop.permute.xlu0 %372
    %v375 = vadd.f32 %v365, %v373
    %v376 = vtanh.pop %v375
    %378 = vrot.lane.b32.xlu0 %v376, 64
    %v379 = vpop.permute.xlu0 %378
    %v381 = vmul.f32 %v363, %v379
    %383 = vrot.lane.b32.xlu0 %v381, 32
    %v384 = vpop.permute.xlu0 %383
    %386 = vst.msk [vmem:[#allocation5 + $0x2] sm:$0x3] %vm278, %v384
    %v387 = vld [vmem:[#allocation4 + $0x4] sm:$0x3]
    %v388 = vld [vmem:[#allocation8] sm:$0xff]
    %v389 = vld [vmem:[#allocation8 + $0x8] sm:$0xff]
    %v390 = vld [vmem:[#allocation8 + $0x10] sm:$0xff]
    %v391 = vld [vmem:[#allocation8 + $0x18] sm:$0xff]
    %v392 = vsel %vm63, %v384, 0
    %394 = vmatprep.subr.mxu0 0.0
    %395 = vmatpush1.msra.mxu0 %v388
    %396 = vmatprep.subr.mxu0 0.0
    %397 = vmatpush1.msra.mxu0 %v389
    %398 = vmatprep.subr.mxu0 0.0
    %399 = vmatpush1.msra.mxu0 %v390
    %400 = vmatprep.subr.mxu0 0.0
    %401 = vmatpush1.msra.mxu0 %v391
    %402 = vmatprep.subr.mxu0 0.0
    %403 = vmatpush1.msra.mxu0 0.0
    %404 = vmatprep.subr.mxu0 0.0
    %405 = vmatpush1.msra.mxu0 0.0
    %406 = vmatprep.subr.mxu0 0.0
    %407 = vmatpush1.msra.mxu0 0.0
    %408 = vmatprep.subr.mxu0 0.0
    %409 = vmatpush1.msra.mxu0 0.0
    %410 = vmatprep.subr.mxu0 0.0
    %411 = vmatpush1.msra.mxu0 0.0
    %412 = vmatprep.subr.mxu0 0.0
    %413 = vmatpush1.msra.mxu0 0.0
    %414 = vmatprep.subr.mxu0 0.0
    %415 = vmatpush1.msra.mxu0 0.0
    %416 = vmatprep.subr.mxu0 0.0
    %417 = vmatpush1.msra.mxu0 0.0
    %418 = vmatprep.subr.mxu0 0.0
    %419 = vmatpush1.msra.mxu0 0.0
    %420 = vmatprep.subr.mxu0 0.0
    %421 = vmatpush1.msra.mxu0 0.0
    %422 = vmatprep.subr.mxu0 0.0
    %423 = vmatpush1.msra.mxu0 0.0
    %424 = vmatprep.subr.mxu0 0.0
    %425 = vmatpush1.msra.mxu0 0.0
    %426 = vmatprep.subr.mxu0 0.0
    %427 = vmatpush1.msra.mxu0 0.0
    %428 = vmatprep.subr.mxu0 0.0
    %429 = vmatpush1.msra.mxu0 0.0
    %430 = vmatprep.subr.mxu0 0.0
    %431 = vmatpush1.msra.mxu0 0.0
    %432 = vmatprep.subr.mxu0 0.0
    %433 = vmatpush1.msra.mxu0 0.0
    %434 = vmatprep.subr.mxu0 0.0
    %435 = vmatpush1.msra.mxu0 0.0
    %436 = vmatprep.subr.mxu0 0.0
    %437 = vmatpush1.msra.mxu0 0.0
    %438 = vmatprep.subr.mxu0 0.0
    %439 = vmatpush1.msra.mxu0 0.0
    %440 = vmatprep.subr.mxu0 0.0
    %441 = vmatpush1.msra.mxu0 0.0
    %442 = vmatprep.subr.mxu0 0.0
    %443 = vmatpush1.msra.mxu0 0.0
    %444 = vmatprep.subr.mxu0 0.0
    %445 = vmatpush1.msra.mxu0 0.0
    %446 = vmatprep.subr.mxu0 0.0
    %447 = vmatpush1.msra.mxu0 0.0
    %448 = vmatprep.subr.mxu0 0.0
    %449 = vmatpush1.msra.mxu0 0.0
    %450 = vmatprep.subr.mxu0 0.0
    %451 = vmatpush1.msra.mxu0 0.0
    %452 = vmatprep.subr.mxu0 0.0
    %453 = vmatpush1.msra.mxu0 0.0
    %454 = vmatprep.subr.mxu0 0.0
    %455 = vmatpush1.msra.mxu0 0.0
    %456 = vmatprep.subr.mxu0 0.0
    %457 = vmatpush1.msra.mxu0 0.0
    %458 = vmatprep.mubr.f32.mxu0 0.0
    %459 = vmatmul.mubr.f32.gmra.mrb[0].mxu0 %v392
    %v460 = vpop.f32.mrb[0].mxu0
    %v461 = vadd.f32 0.0, %v460
    %v462 = vpop.f32.mrb[0].mxu0
    %463 = vdwg.mxu0
    %v464 = vadd.f32 %v387, %v461
    %v465 = vxor.u32 %v464, 2147483648
    %v466 = vmul.f32 %v465, 1.442695
    %v467 = vpow.pop %v466
    %v468 = vadd.f32 %v467, 1.0
    %v469 = vrcp.pop %v468
    %v470 = vmul.f32 1.0, %v469
    %v471 = vtanh.pop %v464
    %v472 = vmul.f32 %v470, %v375
    %474 = vrot.lane.b32.xlu0 %v471, 64
    %v475 = vpop.permute.xlu0 %474
    %v477 = vmul.f32 %v470, %v475
    %479 = vrot.lane.b32.xlu0 %v477, 32
    %v480 = vpop.permute.xlu0 %479
    %v482 = vadd.f32 %v472, %v480
    %v483 = vtanh.pop %v482
    %485 = vrot.lane.b32.xlu0 %v483, 64
    %v486 = vpop.permute.xlu0 %485
    %v488 = vmul.f32 %v470, %v486
    %490 = vrot.lane.b32.xlu0 %v488, 32
    %v491 = vpop.permute.xlu0 %490
    %493 = vst.msk [vmem:[#allocation5 + $0x4] sm:$0x3] %vm278, %v491
    %v494 = vld [vmem:[#allocation4 + $0x6] sm:$0x3]
    %v495 = vld [vmem:[#allocation8] sm:$0xff]
    %v496 = vld [vmem:[#allocation8 + $0x8] sm:$0xff]
    %v497 = vld [vmem:[#allocation8 + $0x10] sm:$0xff]
    %v498 = vld [vmem:[#allocation8 + $0x18] sm:$0xff]
    %v499 = vsel %vm63, %v491, 0
    %501 = vmatprep.subr.mxu0 0.0
    %502 = vmatpush1.msra.mxu0 %v495
    %503 = vmatprep.subr.mxu0 0.0
    %504 = vmatpush1.msra.mxu0 %v496
    %505 = vmatprep.subr.mxu0 0.0
    %506 = vmatpush1.msra.mxu0 %v497
    %507 = vmatprep.subr.mxu0 0.0
    %508 = vmatpush1.msra.mxu0 %v498
    %509 = vmatprep.subr.mxu0 0.0
    %510 = vmatpush1.msra.mxu0 0.0
    %511 = vmatprep.subr.mxu0 0.0
    %512 = vmatpush1.msra.mxu0 0.0
    %513 = vmatprep.subr.mxu0 0.0
    %514 = vmatpush1.msra.mxu0 0.0
    %515 = vmatprep.subr.mxu0 0.0
    %516 = vmatpush1.msra.mxu0 0.0
    %517 = vmatprep.subr.mxu0 0.0
    %518 = vmatpush1.msra.mxu0 0.0
    %519 = vmatprep.subr.mxu0 0.0
    %520 = vmatpush1.msra.mxu0 0.0
    %521 = vmatprep.subr.mxu0 0.0
    %522 = vmatpush1.msra.mxu0 0.0
    %523 = vmatprep.subr.mxu0 0.0
    %524 = vmatpush1.msra.mxu0 0.0
    %525 = vmatprep.subr.mxu0 0.0
    %526 = vmatpush1.msra.mxu0 0.0
    %527 = vmatprep.subr.mxu0 0.0
    %528 = vmatpush1.msra.mxu0 0.0
    %529 = vmatprep.subr.mxu0 0.0
    %530 = vmatpush1.msra.mxu0 0.0
    %531 = vmatprep.subr.mxu0 0.0
    %532 = vmatpush1.msra.mxu0 0.0
    %533 = vmatprep.subr.mxu0 0.0
    %534 = vmatpush1.msra.mxu0 0.0
    %535 = vmatprep.subr.mxu0 0.0
    %536 = vmatpush1.msra.mxu0 0.0
    %537 = vmatprep.subr.mxu0 0.0
    %538 = vmatpush1.msra.mxu0 0.0
    %539 = vmatprep.subr.mxu0 0.0
    %540 = vmatpush1.msra.mxu0 0.0
    %541 = vmatprep.subr.mxu0 0.0
    %542 = vmatpush1.msra.mxu0 0.0
    %543 = vmatprep.subr.mxu0 0.0
    %544 = vmatpush1.msra.mxu0 0.0
    %545 = vmatprep.subr.mxu0 0.0
    %546 = vmatpush1.msra.mxu0 0.0
    %547 = vmatprep.subr.mxu0 0.0
    %548 = vmatpush1.msra.mxu0 0.0
    %549 = vmatprep.subr.mxu0 0.0
    %550 = vmatpush1.msra.mxu0 0.0
    %551 = vmatprep.subr.mxu0 0.0
    %552 = vmatpush1.msra.mxu0 0.0
    %553 = vmatprep.subr.mxu0 0.0
    %554 = vmatpush1.msra.mxu0 0.0
    %555 = vmatprep.subr.mxu0 0.0
    %556 = vmatpush1.msra.mxu0 0.0
    %557 = vmatprep.subr.mxu0 0.0
    %558 = vmatpush1.msra.mxu0 0.0
    %559 = vmatprep.subr.mxu0 0.0
    %560 = vmatpush1.msra.mxu0 0.0
    %561 = vmatprep.subr.mxu0 0.0
    %562 = vmatpush1.msra.mxu0 0.0
    %563 = vmatprep.subr.mxu0 0.0
    %564 = vmatpush1.msra.mxu0 0.0
    %565 = vmatprep.mubr.f32.mxu0 0.0
    %566 = vmatmul.mubr.f32.gmra.mrb[0].mxu0 %v499
    %v567 = vpop.f32.mrb[0].mxu0
    %v568 = vadd.f32 0.0, %v567
    %v569 = vpop.f32.mrb[0].mxu0
    %570 = vdwg.mxu0
    %v571 = vadd.f32 %v494, %v568
    %v572 = vxor.u32 %v571, 2147483648
    %v573 = vmul.f32 %v572, 1.442695
    %v574 = vpow.pop %v573
    %v575 = vadd.f32 %v574, 1.0
    %v576 = vrcp.pop %v575
    %v577 = vmul.f32 1.0, %v576
    %v578 = vtanh.pop %v571
    %v579 = vmul.f32 %v577, %v482
    %581 = vrot.lane.b32.xlu0 %v578, 64
    %v582 = vpop.permute.xlu0 %581
    %v584 = vmul.f32 %v577, %v582
    %586 = vrot.lane.b32.xlu0 %v584, 32
    %v587 = vpop.permute.xlu0 %586
    %v589 = vadd.f32 %v579, %v587
    %v590 = vtanh.pop %v589
    %592 = vrot.lane.b32.xlu0 %v590, 64
    %v593 = vpop.permute.xlu0 %592
    %v595 = vmul.f32 %v577, %v593
    %597 = vrot.lane.b32.xlu0 %v595, 32
    %v598 = vpop.permute.xlu0 %597
    %600 = vst.msk [vmem:[#allocation5 + $0x6] sm:$0x3] %vm278, %v598
    %v601 = vld [vmem:[#allocation4 + $0x8] sm:$0x3]
    %v602 = vld [vmem:[#allocation8] sm:$0xff]
    %v603 = vld [vmem:[#allocation8 + $0x8] sm:$0xff]
    %v604 = vld [vmem:[#allocation8 + $0x10] sm:$0xff]
    %v605 = vld [vmem:[#allocation8 + $0x18] sm:$0xff]
    %v606 = vsel %vm63, %v598, 0
    %608 = vmatprep.subr.mxu0 0.0
    %609 = vmatpush1.msra.mxu0 %v602
    %610 = vmatprep.subr.mxu0 0.0
    %611 = vmatpush1.msra.mxu0 %v603
    %612 = vmatprep.subr.mxu0 0.0
    %613 = vmatpush1.msra.mxu0 %v604
    %614 = vmatprep.subr.mxu0 0.0
    %615 = vmatpush1.msra.mxu0 %v605
    %616 = vmatprep.subr.mxu0 0.0
    %617 = vmatpush1.msra.mxu0 0.0
    %618 = vmatprep.subr.mxu0 0.0
    %619 = vmatpush1.msra.mxu0 0.0
    %620 = vmatprep.subr.mxu0 0.0
    %621 = vmatpush1.msra.mxu0 0.0
    %622 = vmatprep.subr.mxu0 0.0
    %623 = vmatpush1.msra.mxu0 0.0
    %624 = vmatprep.subr.mxu0 0.0
    %625 = vmatpush1.msra.mxu0 0.0
    %626 = vmatprep.subr.mxu0 0.0
    %627 = vmatpush1.msra.mxu0 0.0
    %628 = vmatprep.subr.mxu0 0.0
    %629 = vmatpush1.msra.mxu0 0.0
    %630 = vmatprep.subr.mxu0 0.0
    %631 = vmatpush1.msra.mxu0 0.0
    %632 = vmatprep.subr.mxu0 0.0
    %633 = vmatpush1.msra.mxu0 0.0
    %634 = vmatprep.subr.mxu0 0.0
    %635 = vmatpush1.msra.mxu0 0.0
    %636 = vmatprep.subr.mxu0 0.0
    %637 = vmatpush1.msra.mxu0 0.0
    %638 = vmatprep.subr.mxu0 0.0
    %639 = vmatpush1.msra.mxu0 0.0
    %640 = vmatprep.subr.mxu0 0.0
    %641 = vmatpush1.msra.mxu0 0.0
    %642 = vmatprep.subr.mxu0 0.0
    %643 = vmatpush1.msra.mxu0 0.0
    %644 = vmatprep.subr.mxu0 0.0
    %645 = vmatpush1.msra.mxu0 0.0
    %646 = vmatprep.subr.mxu0 0.0
    %647 = vmatpush1.msra.mxu0 0.0
    %648 = vmatprep.subr.mxu0 0.0
    %649 = vmatpush1.msra.mxu0 0.0
    %650 = vmatprep.subr.mxu0 0.0
    %651 = vmatpush1.msra.mxu0 0.0
    %652 = vmatprep.subr.mxu0 0.0
    %653 = vmatpush1.msra.mxu0 0.0
    %654 = vmatprep.subr.mxu0 0.0
    %655 = vmatpush1.msra.mxu0 0.0
    %656 = vmatprep.subr.mxu0 0.0
    %657 = vmatpush1.msra.mxu0 0.0
    %658 = vmatprep.subr.mxu0 0.0
    %659 = vmatpush1.msra.mxu0 0.0
    %660 = vmatprep.subr.mxu0 0.0
    %661 = vmatpush1.msra.mxu0 0.0
    %662 = vmatprep.subr.mxu0 0.0
    %663 = vmatpush1.msra.mxu0 0.0
    %664 = vmatprep.subr.mxu0 0.0
    %665 = vmatpush1.msra.mxu0 0.0
    %666 = vmatprep.subr.mxu0 0.0
    %667 = vmatpush1.msra.mxu0 0.0
    %668 = vmatprep.subr.mxu0 0.0
    %669 = vmatpush1.msra.mxu0 0.0
    %670 = vmatprep.subr.mxu0 0.0
    %671 = vmatpush1.msra.mxu0 0.0
    %672 = vmatprep.mubr.f32.mxu0 0.0
    %673 = vmatmul.mubr.f32.gmra.mrb[0].mxu0 %v606
    %v674 = vpop.f32.mrb[0].mxu0
    %v675 = vadd.f32 0.0, %v674
    %v676 = vpop.f32.mrb[0].mxu0
    %677 = vdwg.mxu0
    %v678 = vadd.f32 %v601, %v675
    %v679 = vxor.u32 %v678, 2147483648
    %v680 = vmul.f32 %v679, 1.442695
    %v681 = vpow.pop %v680
    %v682 = vadd.f32 %v681, 1.0
    %v683 = vrcp.pop %v682
    %v684 = vmul.f32 1.0, %v683
    %v685 = vtanh.pop %v678
    %v686 = vmul.f32 %v684, %v589
    %688 = vrot.lane.b32.xlu0 %v685, 64
    %v689 = vpop.permute.xlu0 %688
    %v691 = vmul.f32 %v684, %v689
    %693 = vrot.lane.b32.xlu0 %v691, 32
    %v694 = vpop.permute.xlu0 %693
    %v696 = vadd.f32 %v686, %v694
    %v697 = vtanh.pop %v696
    %699 = vrot.lane.b32.xlu0 %v697, 64
    %v700 = vpop.permute.xlu0 %699
    %v702 = vmul.f32 %v684, %v700
    %704 = vrot.lane.b32.xlu0 %v702, 32
    %v705 = vpop.permute.xlu0 %704
    %707 = vst.msk [vmem:[#allocation5 + $0x8] sm:$0x3] %vm278, %v705
    %v708 = vld [vmem:[#allocation4 + $0xa] sm:$0x3]
    %v709 = vld [vmem:[#allocation8] sm:$0xff]
    %v710 = vld [vmem:[#allocation8 + $0x8] sm:$0xff]
    %v711 = vld [vmem:[#allocation8 + $0x10] sm:$0xff]
    %v712 = vld [vmem:[#allocation8 + $0x18] sm:$0xff]
    %v713 = vsel %vm63, %v705, 0
    %715 = vmatprep.subr.mxu0 0.0
    %716 = vmatpush1.msra.mxu0 %v709
    %717 = vmatprep.subr.mxu0 0.0
    %718 = vmatpush1.msra.mxu0 %v710
    %719 = vmatprep.subr.mxu0 0.0
    %720 = vmatpush1.msra.mxu0 %v711
    %721 = vmatprep.subr.mxu0 0.0
    %722 = vmatpush1.msra.mxu0 %v712
    %723 = vmatprep.subr.mxu0 0.0
    %724 = vmatpush1.msra.mxu0 0.0
    %725 = vmatprep.subr.mxu0 0.0
    %726 = vmatpush1.msra.mxu0 0.0
    %727 = vmatprep.subr.mxu0 0.0
    %728 = vmatpush1.msra.mxu0 0.0
    %729 = vmatprep.subr.mxu0 0.0
    %730 = vmatpush1.msra.mxu0 0.0
    %731 = vmatprep.subr.mxu0 0.0
    %732 = vmatpush1.msra.mxu0 0.0
    %733 = vmatprep.subr.mxu0 0.0
    %734 = vmatpush1.msra.mxu0 0.0
    %735 = vmatprep.subr.mxu0 0.0
    %736 = vmatpush1.msra.mxu0 0.0
    %737 = vmatprep.subr.mxu0 0.0
    %738 = vmatpush1.msra.mxu0 0.0
    %739 = vmatprep.subr.mxu0 0.0
    %740 = vmatpush1.msra.mxu0 0.0
    %741 = vmatprep.subr.mxu0 0.0
    %742 = vmatpush1.msra.mxu0 0.0
    %743 = vmatprep.subr.mxu0 0.0
    %744 = vmatpush1.msra.mxu0 0.0
    %745 = vmatprep.subr.mxu0 0.0
    %746 = vmatpush1.msra.mxu0 0.0
    %747 = vmatprep.subr.mxu0 0.0
    %748 = vmatpush1.msra.mxu0 0.0
    %749 = vmatprep.subr.mxu0 0.0
    %750 = vmatpush1.msra.mxu0 0.0
    %751 = vmatprep.subr.mxu0 0.0
    %752 = vmatpush1.msra.mxu0 0.0
    %753 = vmatprep.subr.mxu0 0.0
    %754 = vmatpush1.msra.mxu0 0.0
    %755 = vmatprep.subr.mxu0 0.0
    %756 = vmatpush1.msra.mxu0 0.0
    %757 = vmatprep.subr.mxu0 0.0
    %758 = vmatpush1.msra.mxu0 0.0
    %759 = vmatprep.subr.mxu0 0.0
    %760 = vmatpush1.msra.mxu0 0.0
    %761 = vmatprep.subr.mxu0 0.0
    %762 = vmatpush1.msra.mxu0 0.0
    %763 = vmatprep.subr.mxu0 0.0
    %764 = vmatpush1.msra.mxu0 0.0
    %765 = vmatprep.subr.mxu0 0.0
    %766 = vmatpush1.msra.mxu0 0.0
    %767 = vmatprep.subr.mxu0 0.0
    %768 = vmatpush1.msra.mxu0 0.0
    %769 = vmatprep.subr.mxu0 0.0
    %770 = vmatpush1.msra.mxu0 0.0
    %771 = vmatprep.subr.mxu0 0.0
    %772 = vmatpush1.msra.mxu0 0.0
    %773 = vmatprep.subr.mxu0 0.0
    %774 = vmatpush1.msra.mxu0 0.0
    %775 = vmatprep.subr.mxu0 0.0
    %776 = vmatpush1.msra.mxu0 0.0
    %777 = vmatprep.subr.mxu0 0.0
    %778 = vmatpush1.msra.mxu0 0.0
    %779 = vmatprep.mubr.f32.mxu0 0.0
    %780 = vmatmul.mubr.f32.gmra.mrb[0].mxu0 %v713
    %v781 = vpop.f32.mrb[0].mxu0
    %v782 = vadd.f32 0.0, %v781
    %v783 = vpop.f32.mrb[0].mxu0
    %784 = vdwg.mxu0
    %v785 = vadd.f32 %v708, %v782
    %v786 = vxor.u32 %v785, 2147483648
    %v787 = vmul.f32 %v786, 1.442695
    %v788 = vpow.pop %v787
    %v789 = vadd.f32 %v788, 1.0
    %v790 = vrcp.pop %v789
    %v791 = vmul.f32 1.0, %v790
    %v792 = vtanh.pop %v785
    %v793 = vmul.f32 %v791, %v696
    %795 = vrot.lane.b32.xlu0 %v792, 64
    %v796 = vpop.permute.xlu0 %795
    %v798 = vmul.f32 %v791, %v796
    %800 = vrot.lane.b32.xlu0 %v798, 32
    %v801 = vpop.permute.xlu0 %800
    %v803 = vadd.f32 %v793, %v801
    %v804 = vtanh.pop %v803
    %806 = vrot.lane.b32.xlu0 %v804, 64
    %v807 = vpop.permute.xlu0 %806
    %v809 = vmul.f32 %v791, %v807
    %811 = vrot.lane.b32.xlu0 %v809, 32
    %v812 = vpop.permute.xlu0 %811
    %814 = vst.msk [vmem:[#allocation5 + $0xa] sm:$0x3] %vm278, %v812
    %v815 = vld [vmem:[#allocation4 + $0xc] sm:$0x3]
    %v816 = vld [vmem:[#allocation8] sm:$0xff]
    %v817 = vld [vmem:[#allocation8 + $0x8] sm:$0xff]
    %v818 = vld [vmem:[#allocation8 + $0x10] sm:$0xff]
    %v819 = vld [vmem:[#allocation8 + $0x18] sm:$0xff]
    %v820 = vsel %vm63, %v812, 0
    %822 = vmatprep.subr.mxu0 0.0
    %823 = vmatpush1.msra.mxu0 %v816
    %824 = vmatprep.subr.mxu0 0.0
    %825 = vmatpush1.msra.mxu0 %v817
    %826 = vmatprep.subr.mxu0 0.0
    %827 = vmatpush1.msra.mxu0 %v818
    %828 = vmatprep.subr.mxu0 0.0
    %829 = vmatpush1.msra.mxu0 %v819
    %830 = vmatprep.subr.mxu0 0.0
    %831 = vmatpush1.msra.mxu0 0.0
    %832 = vmatprep.subr.mxu0 0.0
    %833 = vmatpush1.msra.mxu0 0.0
    %834 = vmatprep.subr.mxu0 0.0
    %835 = vmatpush1.msra.mxu0 0.0
    %836 = vmatprep.subr.mxu0 0.0
    %837 = vmatpush1.msra.mxu0 0.0
    %838 = vmatprep.subr.mxu0 0.0
    %839 = vmatpush1.msra.mxu0 0.0
    %840 = vmatprep.subr.mxu0 0.0
    %841 = vmatpush1.msra.mxu0 0.0
    %842 = vmatprep.subr.mxu0 0.0
    %843 = vmatpush1.msra.mxu0 0.0
    %844 = vmatprep.subr.mxu0 0.0
    %845 = vmatpush1.msra.mxu0 0.0
    %846 = vmatprep.subr.mxu0 0.0
    %847 = vmatpush1.msra.mxu0 0.0
    %848 = vmatprep.subr.mxu0 0.0
    %849 = vmatpush1.msra.mxu0 0.0
    %850 = vmatprep.subr.mxu0 0.0
    %851 = vmatpush1.msra.mxu0 0.0
    %852 = vmatprep.subr.mxu0 0.0
    %853 = vmatpush1.msra.mxu0 0.0
    %854 = vmatprep.subr.mxu0 0.0
    %855 = vmatpush1.msra.mxu0 0.0
    %856 = vmatprep.subr.mxu0 0.0
    %857 = vmatpush1.msra.mxu0 0.0
    %858 = vmatprep.subr.mxu0 0.0
    %859 = vmatpush1.msra.mxu0 0.0
    %860 = vmatprep.subr.mxu0 0.0
    %861 = vmatpush1.msra.mxu0 0.0
    %862 = vmatprep.subr.mxu0 0.0
    %863 = vmatpush1.msra.mxu0 0.0
    %864 = vmatprep.subr.mxu0 0.0
    %865 = vmatpush1.msra.mxu0 0.0
    %866 = vmatprep.subr.mxu0 0.0
    %867 = vmatpush1.msra.mxu0 0.0
    %868 = vmatprep.subr.mxu0 0.0
    %869 = vmatpush1.msra.mxu0 0.0
    %870 = vmatprep.subr.mxu0 0.0
    %871 = vmatpush1.msra.mxu0 0.0
    %872 = vmatprep.subr.mxu0 0.0
    %873 = vmatpush1.msra.mxu0 0.0
    %874 = vmatprep.subr.mxu0 0.0
    %875 = vmatpush1.msra.mxu0 0.0
    %876 = vmatprep.subr.mxu0 0.0
    %877 = vmatpush1.msra.mxu0 0.0
    %878 = vmatprep.subr.mxu0 0.0
    %879 = vmatpush1.msra.mxu0 0.0
    %880 = vmatprep.subr.mxu0 0.0
    %881 = vmatpush1.msra.mxu0 0.0
    %882 = vmatprep.subr.mxu0 0.0
    %883 = vmatpush1.msra.mxu0 0.0
    %884 = vmatprep.subr.mxu0 0.0
    %885 = vmatpush1.msra.mxu0 0.0
    %886 = vmatprep.mubr.f32.mxu0 0.0
    %887 = vmatmul.mubr.f32.gmra.mrb[0].mxu0 %v820
    %v888 = vpop.f32.mrb[0].mxu0
    %v889 = vadd.f32 0.0, %v888
    %v890 = vpop.f32.mrb[0].mxu0
    %891 = vdwg.mxu0
    %v892 = vadd.f32 %v815, %v889
    %v893 = vxor.u32 %v892, 2147483648
    %v894 = vmul.f32 %v893, 1.442695
    %v895 = vpow.pop %v894
    %v896 = vadd.f32 %v895, 1.0
    %v897 = vrcp.pop %v896
    %v898 = vmul.f32 1.0, %v897
    %v899 = vtanh.pop %v892
    %v900 = vmul.f32 %v898, %v803
    %902 = vrot.lane.b32.xlu0 %v899, 64
    %v903 = vpop.permute.xlu0 %902
    %v905 = vmul.f32 %v898, %v903
    %907 = vrot.lane.b32.xlu0 %v905, 32
    %v908 = vpop.permute.xlu0 %907
    %v910 = vadd.f32 %v900, %v908
    %v911 = vtanh.pop %v910
    %913 = vrot.lane.b32.xlu0 %v911, 64
    %v914 = vpop.permute.xlu0 %913
    %v916 = vmul.f32 %v898, %v914
    %918 = vrot.lane.b32.xlu0 %v916, 32
    %v919 = vpop.permute.xlu0 %918
    %921 = vst.msk [vmem:[#allocation5 + $0xc] sm:$0x3] %vm278, %v919
    %v922 = vld [vmem:[#allocation4 + $0xe] sm:$0x3]
    %v923 = vld [vmem:[#allocation8] sm:$0xff]
    %v924 = vld [vmem:[#allocation8 + $0x8] sm:$0xff]
    %v925 = vld [vmem:[#allocation8 + $0x10] sm:$0xff]
    %v926 = vld [vmem:[#allocation8 + $0x18] sm:$0xff]
    %v927 = vsel %vm63, %v919, 0
    %929 = vmatprep.subr.mxu0 0.0
    %930 = vmatpush1.msra.mxu0 %v923
    %931 = vmatprep.subr.mxu0 0.0
    %932 = vmatpush1.msra.mxu0 %v924
    %933 = vmatprep.subr.mxu0 0.0
    %934 = vmatpush1.msra.mxu0 %v925
    %935 = vmatprep.subr.mxu0 0.0
    %936 = vmatpush1.msra.mxu0 %v926
    %937 = vmatprep.subr.mxu0 0.0
    %938 = vmatpush1.msra.mxu0 0.0
    %939 = vmatprep.subr.mxu0 0.0
    %940 = vmatpush1.msra.mxu0 0.0
    %941 = vmatprep.subr.mxu0 0.0
    %942 = vmatpush1.msra.mxu0 0.0
    %943 = vmatprep.subr.mxu0 0.0
    %944 = vmatpush1.msra.mxu0 0.0
    %945 = vmatprep.subr.mxu0 0.0
    %946 = vmatpush1.msra.mxu0 0.0
    %947 = vmatprep.subr.mxu0 0.0
    %948 = vmatpush1.msra.mxu0 0.0
    %949 = vmatprep.subr.mxu0 0.0
    %950 = vmatpush1.msra.mxu0 0.0
    %951 = vmatprep.subr.mxu0 0.0
    %952 = vmatpush1.msra.mxu0 0.0
    %953 = vmatprep.subr.mxu0 0.0
    %954 = vmatpush1.msra.mxu0 0.0
    %955 = vmatprep.subr.mxu0 0.0
    %956 = vmatpush1.msra.mxu0 0.0
    %957 = vmatprep.subr.mxu0 0.0
    %958 = vmatpush1.msra.mxu0 0.0
    %959 = vmatprep.subr.mxu0 0.0
    %960 = vmatpush1.msra.mxu0 0.0
    %961 = vmatprep.subr.mxu0 0.0
    %962 = vmatpush1.msra.mxu0 0.0
    %963 = vmatprep.subr.mxu0 0.0
    %964 = vmatpush1.msra.mxu0 0.0
    %965 = vmatprep.subr.mxu0 0.0
    %966 = vmatpush1.msra.mxu0 0.0
    %967 = vmatprep.subr.mxu0 0.0
    %968 = vmatpush1.msra.mxu0 0.0
    %969 = vmatprep.subr.mxu0 0.0
    %970 = vmatpush1.msra.mxu0 0.0
    %971 = vmatprep.subr.mxu0 0.0
    %972 = vmatpush1.msra.mxu0 0.0
    %973 = vmatprep.subr.mxu0 0.0
    %974 = vmatpush1.msra.mxu0 0.0
    %975 = vmatprep.subr.mxu0 0.0
    %976 = vmatpush1.msra.mxu0 0.0
    %977 = vmatprep.subr.mxu0 0.0
    %978 = vmatpush1.msra.mxu0 0.0
    %979 = vmatprep.subr.mxu0 0.0
    %980 = vmatpush1.msra.mxu0 0.0
    %981 = vmatprep.subr.mxu0 0.0
    %982 = vmatpush1.msra.mxu0 0.0
    %983 = vmatprep.subr.mxu0 0.0
    %984 = vmatpush1.msra.mxu0 0.0
    %985 = vmatprep.subr.mxu0 0.0
    %986 = vmatpush1.msra.mxu0 0.0
    %987 = vmatprep.subr.mxu0 0.0
    %988 = vmatpush1.msra.mxu0 0.0
    %989 = vmatprep.subr.mxu0 0.0
    %990 = vmatpush1.msra.mxu0 0.0
    %991 = vmatprep.subr.mxu0 0.0
    %992 = vmatpush1.msra.mxu0 0.0
    %993 = vmatprep.mubr.f32.mxu0 0.0
    %994 = vmatmul.mubr.f32.gmra.mrb[0].mxu0 %v927
    %v995 = vpop.f32.mrb[0].mxu0
    %v996 = vadd.f32 0.0, %v995
    %v997 = vpop.f32.mrb[0].mxu0
    %998 = vdwg.mxu0
    %v999 = vadd.f32 %v922, %v996
    %v1000 = vxor.u32 %v999, 2147483648
    %v1001 = vmul.f32 %v1000, 1.442695
    %v1002 = vpow.pop %v1001
    %v1003 = vadd.f32 %v1002, 1.0
    %v1004 = vrcp.pop %v1003
    %v1005 = vmul.f32 1.0, %v1004
    %v1006 = vtanh.pop %v999
    %v1007 = vmul.f32 %v1005, %v910
    %1009 = vrot.lane.b32.xlu0 %v1006, 64
    %v1010 = vpop.permute.xlu0 %1009
    %v1012 = vmul.f32 %v1005, %v1010
    %1014 = vrot.lane.b32.xlu0 %v1012, 32
    %v1015 = vpop.permute.xlu0 %1014
    %v1017 = vadd.f32 %v1007, %v1015
    %v1018 = vtanh.pop %v1017
    %1020 = vrot.lane.b32.xlu0 %v1018, 64
    %v1021 = vpop.permute.xlu0 %1020
    %v1023 = vmul.f32 %v1005, %v1021
    %1025 = vrot.lane.b32.xlu0 %v1023, 32
    %v1026 = vpop.permute.xlu0 %1025
    %1028 = vst.msk [vmem:[#allocation5 + $0xe] sm:$0x3] %vm278, %v1026
    %v1029 = vld [vmem:[#allocation4 + $0x10] sm:$0x3]
    %v1030 = vld [vmem:[#allocation8] sm:$0xff]
    %v1031 = vld [vmem:[#allocation8 + $0x8] sm:$0xff]
    %v1032 = vld [vmem:[#allocation8 + $0x10] sm:$0xff]
    %v1033 = vld [vmem:[#allocation8 + $0x18] sm:$0xff]
    %v1034 = vsel %vm63, %v1026, 0
    %1036 = vmatprep.subr.mxu0 0.0
    %1037 = vmatpush1.msra.mxu0 %v1030
    %1038 = vmatprep.subr.mxu0 0.0
    %1039 = vmatpush1.msra.mxu0 %v1031
    %1040 = vmatprep.subr.mxu0 0.0
    %1041 = vmatpush1.msra.mxu0 %v1032
    %1042 = vmatprep.subr.mxu0 0.0
    %1043 = vmatpush1.msra.mxu0 %v1033
    %1044 = vmatprep.subr.mxu0 0.0
    %1045 = vmatpush1.msra.mxu0 0.0
    %1046 = vmatprep.subr.mxu0 0.0
    %1047 = vmatpush1.msra.mxu0 0.0
    %1048 = vmatprep.subr.mxu0 0.0
    %1049 = vmatpush1.msra.mxu0 0.0
    %1050 = vmatprep.subr.mxu0 0.0
    %1051 = vmatpush1.msra.mxu0 0.0
    %1052 = vmatprep.subr.mxu0 0.0
    %1053 = vmatpush1.msra.mxu0 0.0
    %1054 = vmatprep.subr.mxu0 0.0
    %1055 = vmatpush1.msra.mxu0 0.0
    %1056 = vmatprep.subr.mxu0 0.0
    %1057 = vmatpush1.msra.mxu0 0.0
    %1058 = vmatprep.subr.mxu0 0.0
    %1059 = vmatpush1.msra.mxu0 0.0
    %1060 = vmatprep.subr.mxu0 0.0
    %1061 = vmatpush1.msra.mxu0 0.0
    %1062 = vmatprep.subr.mxu0 0.0
    %1063 = vmatpush1.msra.mxu0 0.0
    %1064 = vmatprep.subr.mxu0 0.0
    %1065 = vmatpush1.msra.mxu0 0.0
    %1066 = vmatprep.subr.mxu0 0.0
    %1067 = vmatpush1.msra.mxu0 0.0
    %1068 = vmatprep.subr.mxu0 0.0
    %1069 = vmatpush1.msra.mxu0 0.0
    %1070 = vmatprep.subr.mxu0 0.0
    %1071 = vmatpush1.msra.mxu0 0.0
    %1072 = vmatprep.subr.mxu0 0.0
    %1073 = vmatpush1.msra.mxu0 0.0
    %1074 = vmatprep.subr.mxu0 0.0
    %1075 = vmatpush1.msra.mxu0 0.0
    %1076 = vmatprep.subr.mxu0 0.0
    %1077 = vmatpush1.msra.mxu0 0.0
    %1078 = vmatprep.subr.mxu0 0.0
    %1079 = vmatpush1.msra.mxu0 0.0
    %1080 = vmatprep.subr.mxu0 0.0
    %1081 = vmatpush1.msra.mxu0 0.0
    %1082 = vmatprep.subr.mxu0 0.0
    %1083 = vmatpush1.msra.mxu0 0.0
    %1084 = vmatprep.subr.mxu0 0.0
    %1085 = vmatpush1.msra.mxu0 0.0
    %1086 = vmatprep.subr.mxu0 0.0
    %1087 = vmatpush1.msra.mxu0 0.0
    %1088 = vmatprep.subr.mxu0 0.0
    %1089 = vmatpush1.msra.mxu0 0.0
    %1090 = vmatprep.subr.mxu0 0.0
    %1091 = vmatpush1.msra.mxu0 0.0
    %1092 = vmatprep.subr.mxu0 0.0
    %1093 = vmatpush1.msra.mxu0 0.0
    %1094 = vmatprep.subr.mxu0 0.0
    %1095 = vmatpush1.msra.mxu0 0.0
    %1096 = vmatprep.subr.mxu0 0.0
    %1097 = vmatpush1.msra.mxu0 0.0
    %1098 = vmatprep.subr.mxu0 0.0
    %1099 = vmatpush1.msra.mxu0 0.0
    %1100 = vmatprep.mubr.f32.mxu0 0.0
    %1101 = vmatmul.mubr.f32.gmra.mrb[0].mxu0 %v1034
    %v1102 = vpop.f32.mrb[0].mxu0
    %v1103 = vadd.f32 0.0, %v1102
    %v1104 = vpop.f32.mrb[0].mxu0
    %1105 = vdwg.mxu0
    %v1106 = vadd.f32 %v1029, %v1103
    %v1107 = vxor.u32 %v1106, 2147483648
    %v1108 = vmul.f32 %v1107, 1.442695
    %v1109 = vpow.pop %v1108
    %v1110 = vadd.f32 %v1109, 1.0
    %v1111 = vrcp.pop %v1110
    %v1112 = vmul.f32 1.0, %v1111
    %v1113 = vtanh.pop %v1106
    %v1114 = vmul.f32 %v1112, %v1017
    %1116 = vrot.lane.b32.xlu0 %v1113, 64
    %v1117 = vpop.permute.xlu0 %1116
    %v1119 = vmul.f32 %v1112, %v1117
    %1121 = vrot.lane.b32.xlu0 %v1119, 32
    %v1122 = vpop.permute.xlu0 %1121
    %v1124 = vadd.f32 %v1114, %v1122
    %v1125 = vtanh.pop %v1124
    %1127 = vrot.lane.b32.xlu0 %v1125, 64
    %v1128 = vpop.permute.xlu0 %1127
    %v1130 = vmul.f32 %v1112, %v1128
    %1132 = vrot.lane.b32.xlu0 %v1130, 32
    %v1133 = vpop.permute.xlu0 %1132
    %1135 = vst.msk [vmem:[#allocation5 + $0x10] sm:$0x3] %vm278, %v1133
    %v1136 = vld [vmem:[#allocation4 + $0x12] sm:$0x3]
    %v1137 = vld [vmem:[#allocation8] sm:$0xff]
    %v1138 = vld [vmem:[#allocation8 + $0x8] sm:$0xff]
    %v1139 = vld [vmem:[#allocation8 + $0x10] sm:$0xff]
    %v1140 = vld [vmem:[#allocation8 + $0x18] sm:$0xff]
    %v1141 = vsel %vm63, %v1133, 0
    %1143 = vmatprep.subr.mxu0 0.0
    %1144 = vmatpush1.msra.mxu0 %v1137
    %1145 = vmatprep.subr.mxu0 0.0
    %1146 = vmatpush1.msra.mxu0 %v1138
    %1147 = vmatprep.subr.mxu0 0.0
    %1148 = vmatpush1.msra.mxu0 %v1139
    %1149 = vmatprep.subr.mxu0 0.0
    %1150 = vmatpush1.msra.mxu0 %v1140
    %1151 = vmatprep.subr.mxu0 0.0
    %1152 = vmatpush1.msra.mxu0 0.0
    %1153 = vmatprep.subr.mxu0 0.0
    %1154 = vmatpush1.msra.mxu0 0.0
    %1155 = vmatprep.subr.mxu0 0.0
    %1156 = vmatpush1.msra.mxu0 0.0
    %1157 = vmatprep.subr.mxu0 0.0
    %1158 = vmatpush1.msra.mxu0 0.0
    %1159 = vmatprep.subr.mxu0 0.0
    %1160 = vmatpush1.msra.mxu0 0.0
    %1161 = vmatprep.subr.mxu0 0.0
    %1162 = vmatpush1.msra.mxu0 0.0
    %1163 = vmatprep.subr.mxu0 0.0
    %1164 = vmatpush1.msra.mxu0 0.0
    %1165 = vmatprep.subr.mxu0 0.0
    %1166 = vmatpush1.msra.mxu0 0.0
    %1167 = vmatprep.subr.mxu0 0.0
    %1168 = vmatpush1.msra.mxu0 0.0
    %1169 = vmatprep.subr.mxu0 0.0
    %1170 = vmatpush1.msra.mxu0 0.0
    %1171 = vmatprep.subr.mxu0 0.0
    %1172 = vmatpush1.msra.mxu0 0.0
    %1173 = vmatprep.subr.mxu0 0.0
    %1174 = vmatpush1.msra.mxu0 0.0
    %1175 = vmatprep.subr.mxu0 0.0
    %1176 = vmatpush1.msra.mxu0 0.0
    %1177 = vmatprep.subr.mxu0 0.0
    %1178 = vmatpush1.msra.mxu0 0.0
    %1179 = vmatprep.subr.mxu0 0.0
    %1180 = vmatpush1.msra.mxu0 0.0
    %1181 = vmatprep.subr.mxu0 0.0
    %1182 = vmatpush1.msra.mxu0 0.0
    %1183 = vmatprep.subr.mxu0 0.0
    %1184 = vmatpush1.msra.mxu0 0.0
    %1185 = vmatprep.subr.mxu0 0.0
    %1186 = vmatpush1.msra.mxu0 0.0
    %1187 = vmatprep.subr.mxu0 0.0
    %1188 = vmatpush1.msra.mxu0 0.0
    %1189 = vmatprep.subr.mxu0 0.0
    %1190 = vmatpush1.msra.mxu0 0.0
    %1191 = vmatprep.subr.mxu0 0.0
    %1192 = vmatpush1.msra.mxu0 0.0
    %1193 = vmatprep.subr.mxu0 0.0
    %1194 = vmatpush1.msra.mxu0 0.0
    %1195 = vmatprep.subr.mxu0 0.0
    %1196 = vmatpush1.msra.mxu0 0.0
    %1197 = vmatprep.subr.mxu0 0.0
    %1198 = vmatpush1.msra.mxu0 0.0
    %1199 = vmatprep.subr.mxu0 0.0
    %1200 = vmatpush1.msra.mxu0 0.0
    %1201 = vmatprep.subr.mxu0 0.0
    %1202 = vmatpush1.msra.mxu0 0.0
    %1203 = vmatprep.subr.mxu0 0.0
    %1204 = vmatpush1.msra.mxu0 0.0
    %1205 = vmatprep.subr.mxu0 0.0
    %1206 = vmatpush1.msra.mxu0 0.0
    %1207 = vmatprep.mubr.f32.mxu0 0.0
    %1208 = vmatmul.mubr.f32.gmra.mrb[0].mxu0 %v1141
    %v1209 = vpop.f32.mrb[0].mxu0
    %v1210 = vadd.f32 0.0, %v1209
    %v1211 = vpop.f32.mrb[0].mxu0
    %1212 = vdwg.mxu0
    %v1213 = vadd.f32 %v1136, %v1210
    %v1214 = vxor.u32 %v1213, 2147483648
    %v1215 = vmul.f32 %v1214, 1.442695
    %v1216 = vpow.pop %v1215
    %v1217 = vadd.f32 %v1216, 1.0
    %v1218 = vrcp.pop %v1217
    %v1219 = vmul.f32 1.0, %v1218
    %v1220 = vtanh.pop %v1213
    %v1221 = vmul.f32 %v1219, %v1124
    %1223 = vrot.lane.b32.xlu0 %v1220, 64
    %v1224 = vpop.permute.xlu0 %1223
    %v1226 = vmul.f32 %v1219, %v1224
    %1228 = vrot.lane.b32.xlu0 %v1226, 32
    %v1229 = vpop.permute.xlu0 %1228
    %v1231 = vadd.f32 %v1221, %v1229
    %v1232 = vtanh.pop %v1231
    %1234 = vrot.lane.b32.xlu0 %v1232, 64
    %v1235 = vpop.permute.xlu0 %1234
    %v1237 = vmul.f32 %v1219, %v1235
    %1239 = vrot.lane.b32.xlu0 %v1237, 32
    %v1240 = vpop.permute.xlu0 %1239
    %1242 = vst.msk [vmem:[#allocation5 + $0x12] sm:$0x3] %vm278, %v1240
    %v1243 = vld [vmem:[#allocation4 + $0x14] sm:$0x3]
    %v1244 = vld [vmem:[#allocation8] sm:$0xff]
    %v1245 = vld [vmem:[#allocation8 + $0x8] sm:$0xff]
    %v1246 = vld [vmem:[#allocation8 + $0x10] sm:$0xff]
    %v1247 = vld [vmem:[#allocation8 + $0x18] sm:$0xff]
    %v1248 = vsel %vm63, %v1240, 0
    %1250 = vmatprep.subr.mxu0 0.0
    %1251 = vmatpush1.msra.mxu0 %v1244
    %1252 = vmatprep.subr.mxu0 0.0
    %1253 = vmatpush1.msra.mxu0 %v1245
    %1254 = vmatprep.subr.mxu0 0.0
    %1255 = vmatpush1.msra.mxu0 %v1246
    %1256 = vmatprep.subr.mxu0 0.0
    %1257 = vmatpush1.msra.mxu0 %v1247
    %1258 = vmatprep.subr.mxu0 0.0
    %1259 = vmatpush1.msra.mxu0 0.0
    %1260 = vmatprep.subr.mxu0 0.0
    %1261 = vmatpush1.msra.mxu0 0.0
    %1262 = vmatprep.subr.mxu0 0.0
    %1263 = vmatpush1.msra.mxu0 0.0
    %1264 = vmatprep.subr.mxu0 0.0
    %1265 = vmatpush1.msra.mxu0 0.0
    %1266 = vmatprep.subr.mxu0 0.0
    %1267 = vmatpush1.msra.mxu0 0.0
    %1268 = vmatprep.subr.mxu0 0.0
    %1269 = vmatpush1.msra.mxu0 0.0
    %1270 = vmatprep.subr.mxu0 0.0
    %1271 = vmatpush1.msra.mxu0 0.0
    %1272 = vmatprep.subr.mxu0 0.0
    %1273 = vmatpush1.msra.mxu0 0.0
    %1274 = vmatprep.subr.mxu0 0.0
    %1275 = vmatpush1.msra.mxu0 0.0
    %1276 = vmatprep.subr.mxu0 0.0
    %1277 = vmatpush1.msra.mxu0 0.0
    %1278 = vmatprep.subr.mxu0 0.0
    %1279 = vmatpush1.msra.mxu0 0.0
    %1280 = vmatprep.subr.mxu0 0.0
    %1281 = vmatpush1.msra.mxu0 0.0
    %1282 = vmatprep.subr.mxu0 0.0
    %1283 = vmatpush1.msra.mxu0 0.0
    %1284 = vmatprep.subr.mxu0 0.0
    %1285 = vmatpush1.msra.mxu0 0.0
    %1286 = vmatprep.subr.mxu0 0.0
    %1287 = vmatpush1.msra.mxu0 0.0
    %1288 = vmatprep.subr.mxu0 0.0
    %1289 = vmatpush1.msra.mxu0 0.0
    %1290 = vmatprep.subr.mxu0 0.0
    %1291 = vmatpush1.msra.mxu0 0.0
    %1292 = vmatprep.subr.mxu0 0.0
    %1293 = vmatpush1.msra.mxu0 0.0
    %1294 = vmatprep.subr.mxu0 0.0
    %1295 = vmatpush1.msra.mxu0 0.0
    %1296 = vmatprep.subr.mxu0 0.0
    %1297 = vmatpush1.msra.mxu0 0.0
    %1298 = vmatprep.subr.mxu0 0.0
    %1299 = vmatpush1.msra.mxu0 0.0
    %1300 = vmatprep.subr.mxu0 0.0
    %1301 = vmatpush1.msra.mxu0 0.0
    %1302 = vmatprep.subr.mxu0 0.0
    %1303 = vmatpush1.msra.mxu0 0.0
    %1304 = vmatprep.subr.mxu0 0.0
    %1305 = vmatpush1.msra.mxu0 0.0
    %1306 = vmatprep.subr.mxu0 0.0
    %1307 = vmatpush1.msra.mxu0 0.0
    %1308 = vmatprep.subr.mxu0 0.0
    %1309 = vmatpush1.msra.mxu0 0.0
    %1310 = vmatprep.subr.mxu0 0.0
    %1311 = vmatpush1.msra.mxu0 0.0
    %1312 = vmatprep.subr.mxu0 0.0
    %1313 = vmatpush1.msra.mxu0 0.0
    %1314 = vmatprep.mubr.f32.mxu0 0.0
    %1315 = vmatmul.mubr.f32.gmra.mrb[0].mxu0 %v1248
    %v1316 = vpop.f32.mrb[0].mxu0
    %v1317 = vadd.f32 0.0, %v1316
    %v1318 = vpop.f32.mrb[0].mxu0
    %1319 = vdwg.mxu0
    %v1320 = vadd.f32 %v1243, %v1317
    %v1321 = vxor.u32 %v1320, 2147483648
    %v1322 = vmul.f32 %v1321, 1.442695
    %v1323 = vpow.pop %v1322
    %v1324 = vadd.f32 %v1323, 1.0
    %v1325 = vrcp.pop %v1324
    %v1326 = vmul.f32 1.0, %v1325
    %v1327 = vtanh.pop %v1320
    %v1328 = vmul.f32 %v1326, %v1231
    %1330 = vrot.lane.b32.xlu0 %v1327, 64
    %v1331 = vpop.permute.xlu0 %1330
    %v1333 = vmul.f32 %v1326, %v1331
    %1335 = vrot.lane.b32.xlu0 %v1333, 32
    %v1336 = vpop.permute.xlu0 %1335
    %v1338 = vadd.f32 %v1328, %v1336
    %v1339 = vtanh.pop %v1338
    %1341 = vrot.lane.b32.xlu0 %v1339, 64
    %v1342 = vpop.permute.xlu0 %1341
    %v1344 = vmul.f32 %v1326, %v1342
    %1346 = vrot.lane.b32.xlu0 %v1344, 32
    %v1347 = vpop.permute.xlu0 %1346
    %1349 = vst.msk [vmem:[#allocation5 + $0x14] sm:$0x3] %vm278, %v1347
    %v1350 = vld [vmem:[#allocation4 + $0x16] sm:$0x3]
    %v1351 = vld [vmem:[#allocation8] sm:$0xff]
    %v1352 = vld [vmem:[#allocation8 + $0x8] sm:$0xff]
    %v1353 = vld [vmem:[#allocation8 + $0x10] sm:$0xff]
    %v1354 = vld [vmem:[#allocation8 + $0x18] sm:$0xff]
    %v1355 = vsel %vm63, %v1347, 0
    %1357 = vmatprep.subr.mxu0 0.0
    %1358 = vmatpush1.msra.mxu0 %v1351
    %1359 = vmatprep.subr.mxu0 0.0
    %1360 = vmatpush1.msra.mxu0 %v1352
    %1361 = vmatprep.subr.mxu0 0.0
    %1362 = vmatpush1.msra.mxu0 %v1353
    %1363 = vmatprep.subr.mxu0 0.0
    %1364 = vmatpush1.msra.mxu0 %v1354
    %1365 = vmatprep.subr.mxu0 0.0
    %1366 = vmatpush1.msra.mxu0 0.0
    %1367 = vmatprep.subr.mxu0 0.0
    %1368 = vmatpush1.msra.mxu0 0.0
    %1369 = vmatprep.subr.mxu0 0.0
    %1370 = vmatpush1.msra.mxu0 0.0
    %1371 = vmatprep.subr.mxu0 0.0
    %1372 = vmatpush1.msra.mxu0 0.0
    %1373 = vmatprep.subr.mxu0 0.0
    %1374 = vmatpush1.msra.mxu0 0.0
    %1375 = vmatprep.subr.mxu0 0.0
    %1376 = vmatpush1.msra.mxu0 0.0
    %1377 = vmatprep.subr.mxu0 0.0
    %1378 = vmatpush1.msra.mxu0 0.0
    %1379 = vmatprep.subr.mxu0 0.0
    %1380 = vmatpush1.msra.mxu0 0.0
    %1381 = vmatprep.subr.mxu0 0.0
    %1382 = vmatpush1.msra.mxu0 0.0
    %1383 = vmatprep.subr.mxu0 0.0
    %1384 = vmatpush1.msra.mxu0 0.0
    %1385 = vmatprep.subr.mxu0 0.0
    %1386 = vmatpush1.msra.mxu0 0.0
    %1387 = vmatprep.subr.mxu0 0.0
    %1388 = vmatpush1.msra.mxu0 0.0
    %1389 = vmatprep.subr.mxu0 0.0
    %1390 = vmatpush1.msra.mxu0 0.0
    %1391 = vmatprep.subr.mxu0 0.0
    %1392 = vmatpush1.msra.mxu0 0.0
    %1393 = vmatprep.subr.mxu0 0.0
    %1394 = vmatpush1.msra.mxu0 0.0
    %1395 = vmatprep.subr.mxu0 0.0
    %1396 = vmatpush1.msra.mxu0 0.0
    %1397 = vmatprep.subr.mxu0 0.0
    %1398 = vmatpush1.msra.mxu0 0.0
    %1399 = vmatprep.subr.mxu0 0.0
    %1400 = vmatpush1.msra.mxu0 0.0
    %1401 = vmatprep.subr.mxu0 0.0
    %1402 = vmatpush1.msra.mxu0 0.0
    %1403 = vmatprep.subr.mxu0 0.0
    %1404 = vmatpush1.msra.mxu0 0.0
    %1405 = vmatprep.subr.mxu0 0.0
    %1406 = vmatpush1.msra.mxu0 0.0
    %1407 = vmatprep.subr.mxu0 0.0
    %1408 = vmatpush1.msra.mxu0 0.0
    %1409 = vmatprep.subr.mxu0 0.0
    %1410 = vmatpush1.msra.mxu0 0.0
    %1411 = vmatprep.subr.mxu0 0.0
    %1412 = vmatpush1.msra.mxu0 0.0
    %1413 = vmatprep.subr.mxu0 0.0
    %1414 = vmatpush1.msra.mxu0 0.0
    %1415 = vmatprep.subr.mxu0 0.0
    %1416 = vmatpush1.msra.mxu0 0.0
    %1417 = vmatprep.subr.mxu0 0.0
    %1418 = vmatpush1.msra.mxu0 0.0
    %1419 = vmatprep.subr.mxu0 0.0
    %1420 = vmatpush1.msra.mxu0 0.0
    %1421 = vmatprep.mubr.f32.mxu0 0.0
    %1422 = vmatmul.mubr.f32.gmra.mrb[0].mxu0 %v1355
    %v1423 = vpop.f32.mrb[0].mxu0
    %v1424 = vadd.f32 0.0, %v1423
    %v1425 = vpop.f32.mrb[0].mxu0
    %1426 = vdwg.mxu0
    %v1427 = vadd.f32 %v1350, %v1424
    %v1428 = vxor.u32 %v1427, 2147483648
    %v1429 = vmul.f32 %v1428, 1.442695
    %v1430 = vpow.pop %v1429
    %v1431 = vadd.f32 %v1430, 1.0
    %v1432 = vrcp.pop %v1431
    %v1433 = vmul.f32 1.0, %v1432
    %v1434 = vtanh.pop %v1427
    %v1435 = vmul.f32 %v1433, %v1338
    %1437 = vrot.lane.b32.xlu0 %v1434, 64
    %v1438 = vpop.permute.xlu0 %1437
    %v1440 = vmul.f32 %v1433, %v1438
    %1442 = vrot.lane.b32.xlu0 %v1440, 32
    %v1443 = vpop.permute.xlu0 %1442
    %v1445 = vadd.f32 %v1435, %v1443
    %v1446 = vtanh.pop %v1445
    %1448 = vrot.lane.b32.xlu0 %v1446, 64
    %v1449 = vpop.permute.xlu0 %1448
    %v1451 = vmul.f32 %v1433, %v1449
    %1453 = vrot.lane.b32.xlu0 %v1451, 32
    %v1454 = vpop.permute.xlu0 %1453
    %1456 = vst.msk [vmem:[#allocation5 + $0x16] sm:$0x3] %vm278, %v1454
    %v1457 = vld [vmem:[#allocation4 + $0x18] sm:$0x3]
    %v1458 = vld [vmem:[#allocation8] sm:$0xff]
    %v1459 = vld [vmem:[#allocation8 + $0x8] sm:$0xff]
    %v1460 = vld [vmem:[#allocation8 + $0x10] sm:$0xff]
    %v1461 = vld [vmem:[#allocation8 + $0x18] sm:$0xff]
    %v1462 = vsel %vm63, %v1454, 0
    %1464 = vmatprep.subr.mxu0 0.0
    %1465 = vmatpush1.msra.mxu0 %v1458
    %1466 = vmatprep.subr.mxu0 0.0
    %1467 = vmatpush1.msra.mxu0 %v1459
    %1468 = vmatprep.subr.mxu0 0.0
    %1469 = vmatpush1.msra.mxu0 %v1460
    %1470 = vmatprep.subr.mxu0 0.0
    %1471 = vmatpush1.msra.mxu0 %v1461
    %1472 = vmatprep.subr.mxu0 0.0
    %1473 = vmatpush1.msra.mxu0 0.0
    %1474 = vmatprep.subr.mxu0 0.0
    %1475 = vmatpush1.msra.mxu0 0.0
    %1476 = vmatprep.subr.mxu0 0.0
    %1477 = vmatpush1.msra.mxu0 0.0
    %1478 = vmatprep.subr.mxu0 0.0
    %1479 = vmatpush1.msra.mxu0 0.0
    %1480 = vmatprep.subr.mxu0 0.0
    %1481 = vmatpush1.msra.mxu0 0.0
    %1482 = vmatprep.subr.mxu0 0.0
    %1483 = vmatpush1.msra.mxu0 0.0
    %1484 = vmatprep.subr.mxu0 0.0
    %1485 = vmatpush1.msra.mxu0 0.0
    %1486 = vmatprep.subr.mxu0 0.0
    %1487 = vmatpush1.msra.mxu0 0.0
    %1488 = vmatprep.subr.mxu0 0.0
    %1489 = vmatpush1.msra.mxu0 0.0
    %1490 = vmatprep.subr.mxu0 0.0
    %1491 = vmatpush1.msra.mxu0 0.0
    %1492 = vmatprep.subr.mxu0 0.0
    %1493 = vmatpush1.msra.mxu0 0.0
    %1494 = vmatprep.subr.mxu0 0.0
    %1495 = vmatpush1.msra.mxu0 0.0
    %1496 = vmatprep.subr.mxu0 0.0
    %1497 = vmatpush1.msra.mxu0 0.0
    %1498 = vmatprep.subr.mxu0 0.0
    %1499 = vmatpush1.msra.mxu0 0.0
    %1500 = vmatprep.subr.mxu0 0.0
    %1501 = vmatpush1.msra.mxu0 0.0
    %1502 = vmatprep.subr.mxu0 0.0
    %1503 = vmatpush1.msra.mxu0 0.0
    %1504 = vmatprep.subr.mxu0 0.0
    %1505 = vmatpush1.msra.mxu0 0.0
    %1506 = vmatprep.subr.mxu0 0.0
    %1507 = vmatpush1.msra.mxu0 0.0
    %1508 = vmatprep.subr.mxu0 0.0
    %1509 = vmatpush1.msra.mxu0 0.0
    %1510 = vmatprep.subr.mxu0 0.0
    %1511 = vmatpush1.msra.mxu0 0.0
    %1512 = vmatprep.subr.mxu0 0.0
    %1513 = vmatpush1.msra.mxu0 0.0
    %1514 = vmatprep.subr.mxu0 0.0
    %1515 = vmatpush1.msra.mxu0 0.0
    %1516 = vmatprep.subr.mxu0 0.0
    %1517 = vmatpush1.msra.mxu0 0.0
    %1518 = vmatprep.subr.mxu0 0.0
    %1519 = vmatpush1.msra.mxu0 0.0
    %1520 = vmatprep.subr.mxu0 0.0
    %1521 = vmatpush1.msra.mxu0 0.0
    %1522 = vmatprep.subr.mxu0 0.0
    %1523 = vmatpush1.msra.mxu0 0.0
    %1524 = vmatprep.subr.mxu0 0.0
    %1525 = vmatpush1.msra.mxu0 0.0
    %1526 = vmatprep.subr.mxu0 0.0
    %1527 = vmatpush1.msra.mxu0 0.0
    %1528 = vmatprep.mubr.f32.mxu0 0.0
    %1529 = vmatmul.mubr.f32.gmra.mrb[0].mxu0 %v1462
    %v1530 = vpop.f32.mrb[0].mxu0
    %v1531 = vadd.f32 0.0, %v1530
    %v1532 = vpop.f32.mrb[0].mxu0
    %1533 = vdwg.mxu0
    %v1534 = vadd.f32 %v1457, %v1531
    %v1535 = vxor.u32 %v1534, 2147483648
    %v1536 = vmul.f32 %v1535, 1.442695
    %v1537 = vpow.pop %v1536
    %v1538 = vadd.f32 %v1537, 1.0
    %v1539 = vrcp.pop %v1538
    %v1540 = vmul.f32 1.0, %v1539
    %v1541 = vtanh.pop %v1534
    %v1542 = vmul.f32 %v1540, %v1445
    %1544 = vrot.lane.b32.xlu0 %v1541, 64
    %v1545 = vpop.permute.xlu0 %1544
    %v1547 = vmul.f32 %v1540, %v1545
    %1549 = vrot.lane.b32.xlu0 %v1547, 32
    %v1550 = vpop.permute.xlu0 %1549
    %v1552 = vadd.f32 %v1542, %v1550
    %v1553 = vtanh.pop %v1552
    %1555 = vrot.lane.b32.xlu0 %v1553, 64
    %v1556 = vpop.permute.xlu0 %1555
    %v1558 = vmul.f32 %v1540, %v1556
    %1560 = vrot.lane.b32.xlu0 %v1558, 32
    %v1561 = vpop.permute.xlu0 %1560
    %1563 = vst.msk [vmem:[#allocation5 + $0x18] sm:$0x3] %vm278, %v1561
    %v1564 = vld [vmem:[#allocation4 + $0x1a] sm:$0x3]
    %v1565 = vld [vmem:[#allocation8] sm:$0xff]
    %v1566 = vld [vmem:[#allocation8 + $0x8] sm:$0xff]
    %v1567 = vld [vmem:[#allocation8 + $0x10] sm:$0xff]
    %v1568 = vld [vmem:[#allocation8 + $0x18] sm:$0xff]
    %v1569 = vsel %vm63, %v1561, 0
    %1571 = vmatprep.subr.mxu0 0.0
    %1572 = vmatpush1.msra.mxu0 %v1565
    %1573 = vmatprep.subr.mxu0 0.0
    %1574 = vmatpush1.msra.mxu0 %v1566
    %1575 = vmatprep.subr.mxu0 0.0
    %1576 = vmatpush1.msra.mxu0 %v1567
    %1577 = vmatprep.subr.mxu0 0.0
    %1578 = vmatpush1.msra.mxu0 %v1568
    %1579 = vmatprep.subr.mxu0 0.0
    %1580 = vmatpush1.msra.mxu0 0.0
    %1581 = vmatprep.subr.mxu0 0.0
    %1582 = vmatpush1.msra.mxu0 0.0
    %1583 = vmatprep.subr.mxu0 0.0
    %1584 = vmatpush1.msra.mxu0 0.0
    %1585 = vmatprep.subr.mxu0 0.0
    %1586 = vmatpush1.msra.mxu0 0.0
    %1587 = vmatprep.subr.mxu0 0.0
    %1588 = vmatpush1.msra.mxu0 0.0
    %1589 = vmatprep.subr.mxu0 0.0
    %1590 = vmatpush1.msra.mxu0 0.0
    %1591 = vmatprep.subr.mxu0 0.0
    %1592 = vmatpush1.msra.mxu0 0.0
    %1593 = vmatprep.subr.mxu0 0.0
    %1594 = vmatpush1.msra.mxu0 0.0
    %1595 = vmatprep.subr.mxu0 0.0
    %1596 = vmatpush1.msra.mxu0 0.0
    %1597 = vmatprep.subr.mxu0 0.0
    %1598 = vmatpush1.msra.mxu0 0.0
    %1599 = vmatprep.subr.mxu0 0.0
    %1600 = vmatpush1.msra.mxu0 0.0
    %1601 = vmatprep.subr.mxu0 0.0
    %1602 = vmatpush1.msra.mxu0 0.0
    %1603 = vmatprep.subr.mxu0 0.0
    %1604 = vmatpush1.msra.mxu0 0.0
    %1605 = vmatprep.subr.mxu0 0.0
    %1606 = vmatpush1.msra.mxu0 0.0
    %1607 = vmatprep.subr.mxu0 0.0
    %1608 = vmatpush1.msra.mxu0 0.0
    %1609 = vmatprep.subr.mxu0 0.0
    %1610 = vmatpush1.msra.mxu0 0.0
    %1611 = vmatprep.subr.mxu0 0.0
    %1612 = vmatpush1.msra.mxu0 0.0
    %1613 = vmatprep.subr.mxu0 0.0
    %1614 = vmatpush1.msra.mxu0 0.0
    %1615 = vmatprep.subr.mxu0 0.0
    %1616 = vmatpush1.msra.mxu0 0.0
    %1617 = vmatprep.subr.mxu0 0.0
    %1618 = vmatpush1.msra.mxu0 0.0
    %1619 = vmatprep.subr.mxu0 0.0
    %1620 = vmatpush1.msra.mxu0 0.0
    %1621 = vmatprep.subr.mxu0 0.0
    %1622 = vmatpush1.msra.mxu0 0.0
    %1623 = vmatprep.subr.mxu0 0.0
    %1624 = vmatpush1.msra.mxu0 0.0
    %1625 = vmatprep.subr.mxu0 0.0
    %1626 = vmatpush1.msra.mxu0 0.0
    %1627 = vmatprep.subr.mxu0 0.0
    %1628 = vmatpush1.msra.mxu0 0.0
    %1629 = vmatprep.subr.mxu0 0.0
    %1630 = vmatpush1.msra.mxu0 0.0
    %1631 = vmatprep.subr.mxu0 0.0
    %1632 = vmatpush1.msra.mxu0 0.0
    %1633 = vmatprep.subr.mxu0 0.0
    %1634 = vmatpush1.msra.mxu0 0.0
    %1635 = vmatprep.mubr.f32.mxu0 0.0
    %1636 = vmatmul.mubr.f32.gmra.mrb[0].mxu0 %v1569
    %v1637 = vpop.f32.mrb[0].mxu0
    %v1638 = vadd.f32 0.0, %v1637
    %v1639 = vpop.f32.mrb[0].mxu0
    %1640 = vdwg.mxu0
    %v1641 = vadd.f32 %v1564, %v1638
    %v1642 = vxor.u32 %v1641, 2147483648
    %v1643 = vmul.f32 %v1642, 1.442695
    %v1644 = vpow.pop %v1643
    %v1645 = vadd.f32 %v1644, 1.0
    %v1646 = vrcp.pop %v1645
    %v1647 = vmul.f32 1.0, %v1646
    %v1648 = vtanh.pop %v1641
    %v1649 = vmul.f32 %v1647, %v1552
    %1651 = vrot.lane.b32.xlu0 %v1648, 64
    %v1652 = vpop.permute.xlu0 %1651
    %v1654 = vmul.f32 %v1647, %v1652
    %1656 = vrot.lane.b32.xlu0 %v1654, 32
    %v1657 = vpop.permute.xlu0 %1656
    %v1659 = vadd.f32 %v1649, %v1657
    %v1660 = vtanh.pop %v1659
    %1662 = vrot.lane.b32.xlu0 %v1660, 64
    %v1663 = vpop.permute.xlu0 %1662
    %v1665 = vmul.f32 %v1647, %v1663
    %1667 = vrot.lane.b32.xlu0 %v1665, 32
    %v1668 = vpop.permute.xlu0 %1667
    %1670 = vst.msk [vmem:[#allocation5 + $0x1a] sm:$0x3] %vm278, %v1668
    %v1671 = vld [vmem:[#allocation4 + $0x1c] sm:$0x3]
    %v1672 = vld [vmem:[#allocation8] sm:$0xff]
    %v1673 = vld [vmem:[#allocation8 + $0x8] sm:$0xff]
    %v1674 = vld [vmem:[#allocation8 + $0x10] sm:$0xff]
    %v1675 = vld [vmem:[#allocation8 + $0x18] sm:$0xff]
    %v1676 = vsel %vm63, %v1668, 0
    %1678 = vmatprep.subr.mxu0 0.0
    %1679 = vmatpush1.msra.mxu0 %v1672
    %1680 = vmatprep.subr.mxu0 0.0
    %1681 = vmatpush1.msra.mxu0 %v1673
    %1682 = vmatprep.subr.mxu0 0.0
    %1683 = vmatpush1.msra.mxu0 %v1674
    %1684 = vmatprep.subr.mxu0 0.0
    %1685 = vmatpush1.msra.mxu0 %v1675
    %1686 = vmatprep.subr.mxu0 0.0
    %1687 = vmatpush1.msra.mxu0 0.0
    %1688 = vmatprep.subr.mxu0 0.0
    %1689 = vmatpush1.msra.mxu0 0.0
    %1690 = vmatprep.subr.mxu0 0.0
    %1691 = vmatpush1.msra.mxu0 0.0
    %1692 = vmatprep.subr.mxu0 0.0
    %1693 = vmatpush1.msra.mxu0 0.0
    %1694 = vmatprep.subr.mxu0 0.0
    %1695 = vmatpush1.msra.mxu0 0.0
    %1696 = vmatprep.subr.mxu0 0.0
    %1697 = vmatpush1.msra.mxu0 0.0
    %1698 = vmatprep.subr.mxu0 0.0
    %1699 = vmatpush1.msra.mxu0 0.0
    %1700 = vmatprep.subr.mxu0 0.0
    %1701 = vmatpush1.msra.mxu0 0.0
    %1702 = vmatprep.subr.mxu0 0.0
    %1703 = vmatpush1.msra.mxu0 0.0
    %1704 = vmatprep.subr.mxu0 0.0
    %1705 = vmatpush1.msra.mxu0 0.0
    %1706 = vmatprep.subr.mxu0 0.0
    %1707 = vmatpush1.msra.mxu0 0.0
    %1708 = vmatprep.subr.mxu0 0.0
    %1709 = vmatpush1.msra.mxu0 0.0
    %1710 = vmatprep.subr.mxu0 0.0
    %1711 = vmatpush1.msra.mxu0 0.0
    %1712 = vmatprep.subr.mxu0 0.0
    %1713 = vmatpush1.msra.mxu0 0.0
    %1714 = vmatprep.subr.mxu0 0.0
    %1715 = vmatpush1.msra.mxu0 0.0
    %1716 = vmatprep.subr.mxu0 0.0
    %1717 = vmatpush1.msra.mxu0 0.0
    %1718 = vmatprep.subr.mxu0 0.0
    %1719 = vmatpush1.msra.mxu0 0.0
    %1720 = vmatprep.subr.mxu0 0.0
    %1721 = vmatpush1.msra.mxu0 0.0
    %1722 = vmatprep.subr.mxu0 0.0
    %1723 = vmatpush1.msra.mxu0 0.0
    %1724 = vmatprep.subr.mxu0 0.0
    %1725 = vmatpush1.msra.mxu0 0.0
    %1726 = vmatprep.subr.mxu0 0.0
    %1727 = vmatpush1.msra.mxu0 0.0
    %1728 = vmatprep.subr.mxu0 0.0
    %1729 = vmatpush1.msra.mxu0 0.0
    %1730 = vmatprep.subr.mxu0 0.0
    %1731 = vmatpush1.msra.mxu0 0.0
    %1732 = vmatprep.subr.mxu0 0.0
    %1733 = vmatpush1.msra.mxu0 0.0
    %1734 = vmatprep.subr.mxu0 0.0
    %1735 = vmatpush1.msra.mxu0 0.0
    %1736 = vmatprep.subr.mxu0 0.0
    %1737 = vmatpush1.msra.mxu0 0.0
    %1738 = vmatprep.subr.mxu0 0.0
    %1739 = vmatpush1.msra.mxu0 0.0
    %1740 = vmatprep.subr.mxu0 0.0
    %1741 = vmatpush1.msra.mxu0 0.0
    %1742 = vmatprep.mubr.f32.mxu0 0.0
    %1743 = vmatmul.mubr.f32.gmra.mrb[0].mxu0 %v1676
    %v1744 = vpop.f32.mrb[0].mxu0
    %v1745 = vadd.f32 0.0, %v1744
    %v1746 = vpop.f32.mrb[0].mxu0
    %1747 = vdwg.mxu0
    %v1748 = vadd.f32 %v1671, %v1745
    %v1749 = vxor.u32 %v1748, 2147483648
    %v1750 = vmul.f32 %v1749, 1.442695
    %v1751 = vpow.pop %v1750
    %v1752 = vadd.f32 %v1751, 1.0
    %v1753 = vrcp.pop %v1752
    %v1754 = vmul.f32 1.0, %v1753
    %v1755 = vtanh.pop %v1748
    %v1756 = vmul.f32 %v1754, %v1659
    %1758 = vrot.lane.b32.xlu0 %v1755, 64
    %v1759 = vpop.permute.xlu0 %1758
    %v1761 = vmul.f32 %v1754, %v1759
    %1763 = vrot.lane.b32.xlu0 %v1761, 32
    %v1764 = vpop.permute.xlu0 %1763
    %v1766 = vadd.f32 %v1756, %v1764
    %v1767 = vtanh.pop %v1766
    %1769 = vrot.lane.b32.xlu0 %v1767, 64
    %v1770 = vpop.permute.xlu0 %1769
    %v1772 = vmul.f32 %v1754, %v1770
    %1774 = vrot.lane.b32.xlu0 %v1772, 32
    %v1775 = vpop.permute.xlu0 %1774
    %1777 = vst.msk [vmem:[#allocation5 + $0x1c] sm:$0x3] %vm278, %v1775
    %v1778 = vld [vmem:[#allocation4 + $0x1e] sm:$0x3]
    %v1779 = vld [vmem:[#allocation8] sm:$0xff]
    %v1780 = vld [vmem:[#allocation8 + $0x8] sm:$0xff]
    %v1781 = vld [vmem:[#allocation8 + $0x10] sm:$0xff]
    %v1782 = vld [vmem:[#allocation8 + $0x18] sm:$0xff]
    %v1783 = vsel %vm63, %v1775, 0
    %1785 = vmatprep.subr.mxu0 0.0
    %1786 = vmatpush1.msra.mxu0 %v1779
    %1787 = vmatprep.subr.mxu0 0.0
    %1788 = vmatpush1.msra.mxu0 %v1780
    %1789 = vmatprep.subr.mxu0 0.0
    %1790 = vmatpush1.msra.mxu0 %v1781
    %1791 = vmatprep.subr.mxu0 0.0
    %1792 = vmatpush1.msra.mxu0 %v1782
    %1793 = vmatprep.subr.mxu0 0.0
    %1794 = vmatpush1.msra.mxu0 0.0
    %1795 = vmatprep.subr.mxu0 0.0
    %1796 = vmatpush1.msra.mxu0 0.0
    %1797 = vmatprep.subr.mxu0 0.0
    %1798 = vmatpush1.msra.mxu0 0.0
    %1799 = vmatprep.subr.mxu0 0.0
    %1800 = vmatpush1.msra.mxu0 0.0
    %1801 = vmatprep.subr.mxu0 0.0
    %1802 = vmatpush1.msra.mxu0 0.0
    %1803 = vmatprep.subr.mxu0 0.0
    %1804 = vmatpush1.msra.mxu0 0.0
    %1805 = vmatprep.subr.mxu0 0.0
    %1806 = vmatpush1.msra.mxu0 0.0
    %1807 = vmatprep.subr.mxu0 0.0
    %1808 = vmatpush1.msra.mxu0 0.0
    %1809 = vmatprep.subr.mxu0 0.0
    %1810 = vmatpush1.msra.mxu0 0.0
    %1811 = vmatprep.subr.mxu0 0.0
    %1812 = vmatpush1.msra.mxu0 0.0
    %1813 = vmatprep.subr.mxu0 0.0
    %1814 = vmatpush1.msra.mxu0 0.0
    %1815 = vmatprep.subr.mxu0 0.0
    %1816 = vmatpush1.msra.mxu0 0.0
    %1817 = vmatprep.subr.mxu0 0.0
    %1818 = vmatpush1.msra.mxu0 0.0
    %1819 = vmatprep.subr.mxu0 0.0
    %1820 = vmatpush1.msra.mxu0 0.0
    %1821 = vmatprep.subr.mxu0 0.0
    %1822 = vmatpush1.msra.mxu0 0.0
    %1823 = vmatprep.subr.mxu0 0.0
    %1824 = vmatpush1.msra.mxu0 0.0
    %1825 = vmatprep.subr.mxu0 0.0
    %1826 = vmatpush1.msra.mxu0 0.0
    %1827 = vmatprep.subr.mxu0 0.0
    %1828 = vmatpush1.msra.mxu0 0.0
    %1829 = vmatprep.subr.mxu0 0.0
    %1830 = vmatpush1.msra.mxu0 0.0
    %1831 = vmatprep.subr.mxu0 0.0
    %1832 = vmatpush1.msra.mxu0 0.0
    %1833 = vmatprep.subr.mxu0 0.0
    %1834 = vmatpush1.msra.mxu0 0.0
    %1835 = vmatprep.subr.mxu0 0.0
    %1836 = vmatpush1.msra.mxu0 0.0
    %1837 = vmatprep.subr.mxu0 0.0
    %1838 = vmatpush1.msra.mxu0 0.0
    %1839 = vmatprep.subr.mxu0 0.0
    %1840 = vmatpush1.msra.mxu0 0.0
    %1841 = vmatprep.subr.mxu0 0.0
    %1842 = vmatpush1.msra.mxu0 0.0
    %1843 = vmatprep.subr.mxu0 0.0
    %1844 = vmatpush1.msra.mxu0 0.0
    %1845 = vmatprep.subr.mxu0 0.0
    %1846 = vmatpush1.msra.mxu0 0.0
    %1847 = vmatprep.subr.mxu0 0.0
    %1848 = vmatpush1.msra.mxu0 0.0
    %1849 = vmatprep.mubr.f32.mxu0 0.0
    %1850 = vmatmul.mubr.f32.gmra.mrb[0].mxu0 %v1783
    %v1851 = vpop.f32.mrb[0].mxu0
    %v1852 = vadd.f32 0.0, %v1851
    %v1853 = vpop.f32.mrb[0].mxu0
    %1854 = vdwg.mxu0
    %v1855 = vadd.f32 %v1778, %v1852
    %v1856 = vxor.u32 %v1855, 2147483648
    %v1857 = vmul.f32 %v1856, 1.442695
    %v1858 = vpow.pop %v1857
    %v1859 = vadd.f32 %v1858, 1.0
    %v1860 = vrcp.pop %v1859
    %v1861 = vmul.f32 1.0, %v1860
    %v1862 = vtanh.pop %v1855
    %v1863 = vmul.f32 %v1861, %v1766
    %1865 = vrot.lane.b32.xlu0 %v1862, 64
    %v1866 = vpop.permute.xlu0 %1865
    %v1868 = vmul.f32 %v1861, %v1866
    %1870 = vrot.lane.b32.xlu0 %v1868, 32
    %v1871 = vpop.permute.xlu0 %1870
    %v1873 = vadd.f32 %v1863, %v1871
    %v1874 = vtanh.pop %v1873
    %1876 = vrot.lane.b32.xlu0 %v1874, 64
    %v1877 = vpop.permute.xlu0 %1876
    %v1879 = vmul.f32 %v1861, %v1877
    %1881 = vrot.lane.b32.xlu0 %v1879, 32
    %v1882 = vpop.permute.xlu0 %1881
    %1884 = vst.msk [vmem:[#allocation5 + $0x1e] sm:$0x3] %vm278, %v1882
    %1885 = vst.msk [vmem:[#allocation2] sm:$0x3] %vm278, %v1882
    %1887 = vrot.lane.b32.xlu0 %v1873, 96
    %v1888 = vpop.permute.xlu0 %1887
    %1890 = vst.msk [vmem:[#allocation3] sm:$0x3] %vm278, %v1888
    %v1891 = vld [vmem:[#allocation5] sm:$0xff]
    %v1892 = vld [vmem:[#allocation5 + $0x8] sm:$0xff]
    %v1893 = vld [vmem:[#allocation5 + $0x10] sm:$0xff]
    %v1894 = vld [vmem:[#allocation5 + $0x18] sm:$0xff]
    %v1895 = vld [vmem:[%s3] sm:$0xff]
    %v1896 = vld [vmem:[%s3 + $0x8] sm:$0xff]
    %v1897 = vld [vmem:[%s3 + $0x10] sm:$0xff]
    %v1898 = vld [vmem:[%s3 + $0x18] sm:$0xff]
    %v1899 = vld [vmem:[%s4] sm:$0x1]
    %v1901 = vlaneseq
    %v1902 = vshrl.u32 %v1901, 7
    %v1903 = vsub.s32 0, %v1902
    %v1904 = vrot.slane %v1899, %v1903
    %v1907 = vsel %vm63, %v1891, 0
    %v1910 = vsel %vm63, %v1892, 0
    %v1913 = vsel %vm63, %v1893, 0
    %v1916 = vsel %vm63, %v1894, 0
    %1918 = vmatprep.subr.mxu0 0.0
    %1919 = vmatpush1.msra.mxu0 %v1895
    %1920 = vmatprep.subr.mxu0 0.0
    %1921 = vmatpush1.msra.mxu0 %v1896
    %1922 = vmatprep.subr.mxu0 0.0
    %1923 = vmatpush1.msra.mxu0 %v1897
    %1924 = vmatprep.subr.mxu0 0.0
    %1925 = vmatpush1.msra.mxu0 %v1898
    %1926 = vmatprep.subr.mxu0 0.0
    %1927 = vmatpush1.msra.mxu0 0.0
    %1928 = vmatprep.subr.mxu0 0.0
    %1929 = vmatpush1.msra.mxu0 0.0
    %1930 = vmatprep.subr.mxu0 0.0
    %1931 = vmatpush1.msra.mxu0 0.0
    %1932 = vmatprep.subr.mxu0 0.0
    %1933 = vmatpush1.msra.mxu0 0.0
    %1934 = vmatprep.subr.mxu0 0.0
    %1935 = vmatpush1.msra.mxu0 0.0
    %1936 = vmatprep.subr.mxu0 0.0
    %1937 = vmatpush1.msra.mxu0 0.0
    %1938 = vmatprep.subr.mxu0 0.0
    %1939 = vmatpush1.msra.mxu0 0.0
    %1940 = vmatprep.subr.mxu0 0.0
    %1941 = vmatpush1.msra.mxu0 0.0
    %1942 = vmatprep.subr.mxu0 0.0
    %1943 = vmatpush1.msra.mxu0 0.0
    %1944 = vmatprep.subr.mxu0 0.0
    %1945 = vmatpush1.msra.mxu0 0.0
    %1946 = vmatprep.subr.mxu0 0.0
    %1947 = vmatpush1.msra.mxu0 0.0
    %1948 = vmatprep.subr.mxu0 0.0
    %1949 = vmatpush1.msra.mxu0 0.0
    %1950 = vmatprep.subr.mxu0 0.0
    %1951 = vmatpush1.msra.mxu0 0.0
    %1952 = vmatprep.subr.mxu0 0.0
    %1953 = vmatpush1.msra.mxu0 0.0
    %1954 = vmatprep.subr.mxu0 0.0
    %1955 = vmatpush1.msra.mxu0 0.0
    %1956 = vmatprep.subr.mxu0 0.0
    %1957 = vmatpush1.msra.mxu0 0.0
    %1958 = vmatprep.subr.mxu0 0.0
    %1959 = vmatpush1.msra.mxu0 0.0
    %1960 = vmatprep.subr.mxu0 0.0
    %1961 = vmatpush1.msra.mxu0 0.0
    %1962 = vmatprep.subr.mxu0 0.0
    %1963 = vmatpush1.msra.mxu0 0.0
    %1964 = vmatprep.subr.mxu0 0.0
    %1965 = vmatpush1.msra.mxu0 0.0
    %1966 = vmatprep.subr.mxu0 0.0
    %1967 = vmatpush1.msra.mxu0 0.0
    %1968 = vmatprep.subr.mxu0 0.0
    %1969 = vmatpush1.msra.mxu0 0.0
    %1970 = vmatprep.subr.mxu0 0.0
    %1971 = vmatpush1.msra.mxu0 0.0
    %1972 = vmatprep.subr.mxu0 0.0
    %1973 = vmatpush1.msra.mxu0 0.0
    %1974 = vmatprep.subr.mxu0 0.0
    %1975 = vmatpush1.msra.mxu0 0.0
    %1976 = vmatprep.subr.mxu0 0.0
    %1977 = vmatpush1.msra.mxu0 0.0
    %1978 = vmatprep.subr.mxu0 0.0
    %1979 = vmatpush1.msra.mxu0 0.0
    %1980 = vmatprep.subr.mxu0 0.0
    %1981 = vmatpush1.msra.mxu0 0.0
    %1982 = vmatprep.mubr.f32.mxu0 0.0
    %1983 = vmatmul.mubr.f32.gmra.mrb[0].mxu0 %v1907
    %v1984 = vpop.f32.mrb[0].mxu0
    %v1985 = vadd.f32 %v1904, %v1984
    %v1986 = vpop.f32.mrb[0].mxu0
    %1987 = vmatprep.mubr.f32.mxu0 0.0
    %1988 = vmatmul.mubr.f32.gmra.mrb[0].mxu0 %v1910
    %v1989 = vpop.f32.mrb[0].mxu0
    %v1990 = vadd.f32 %v1904, %v1989
    %v1991 = vpop.f32.mrb[0].mxu0
    %1992 = vmatprep.mubr.f32.mxu0 0.0
    %1993 = vmatmul.mubr.f32.gmra.mrb[0].mxu0 %v1913
    %v1994 = vpop.f32.mrb[0].mxu0
    %v1995 = vadd.f32 %v1904, %v1994
    %v1996 = vpop.f32.mrb[0].mxu0
    %1997 = vmatprep.mubr.f32.mxu0 0.0
    %1998 = vmatmul.mubr.f32.gmra.mrb[0].mxu0 %v1916
    %v1999 = vpop.f32.mrb[0].mxu0
    %v2000 = vadd.f32 %v1904, %v1999
    %v2001 = vpop.f32.mrb[0].mxu0
    %2002 = vdwg.mxu0
    %vm2003 = vcmask 15360
    %2004 = vst.msk [vmem:[%s5] sm:$0xff] %vm2003, %v1985
    %2005 = vst.msk [vmem:[%s5 + $0x8] sm:$0xff] %vm2003, %v1990
    %2006 = vst.msk [vmem:[%s5 + $0x10] sm:$0xff] %vm2003, %v1995
    %2007 = vst.msk [vmem:[%s5 + $0x18] sm:$0xff] %vm2003, %v2000
    // Predicated region
    $region34: #{tpu_custom_call.1} parent=1 // pred_check
      _
    $region35: #{tpu_custom_call.1} parent=1 // pred_check_branch
      %2009 = sbr.rel (0) target = $region37
    $region36: #{tpu_custom_call.1} parent=1 // pred_region
      _
    $region37: #{tpu_custom_call.1} parent=1 // pred_fallthru
      _
    // Predicated region
    $region38: #{tpu_custom_call.1} parent=1 // pred_check
      _
    $region39: #{tpu_custom_call.1} parent=1 // pred_check_branch
      %2011 = sbr.rel (0) target = $region41
    $region40: #{tpu_custom_call.1} parent=1 // pred_region
      _
    $region41: #{tpu_custom_call.1} parent=1 // pred_fallthru
      _
    %2012 = vsyncpa [#allocation7], 1
    %2013 = vsyncpa [#allocation9], 1

</llo_original>
